<compile_context>
chip_gen: v5e
topology: v5e:2x2
jax: 0.10.0
libtpu: 0.0.40
codegen_flags: <defaults>
</compile_context>

<pallas_src>
import math
import functools
import jax
import jax.numpy as jnp
from jax.experimental import pallas as pl
from jax.experimental.pallas import tpu as pltpu

_INV_SQRT2 = 1.0 / math.sqrt(2.0)
_LN_EPS = 1e-5                      # PyTorch LayerNorm default
_PREC = jax.lax.Precision.HIGHEST   # true-f32 MXU path, matches PyTorch f32 numerics


def _projection_head_kernel(x_ref, w1_ref, w2_ref, params_ref, o_ref):
    x = x_ref[...]                                               # (TM, E) f32

    b1 = params_ref[0:1, :]                                      # (1, P)
    b2 = params_ref[1:2, :]
    gamma = params_ref[2:3, :]
    beta = params_ref[3:4, :]

    # projection = x @ W1 + b1   (K = E = 32: intentionally left untouched, ~11% of FLOPs)
    projected = jnp.dot(x, w1_ref[...],
                        preferred_element_type=jnp.float32,
                        precision=_PREC) + b1

    # exact GELU (erf formulation, torch.nn.GELU default)
    h = 0.5 * projected * (1.0 + jax.lax.erf(projected * _INV_SQRT2))

    # fc = gelu @ W2 + b2
    y = jnp.dot(h, w2_ref[...],
                preferred_element_type=jnp.float32,
                precision=_PREC) + b2

    # dropout: inference mode -> identity
    # TODO(synk): training-mode dropout (random mask + 1/(1-p) scaling) not emitted.

    # residual connection
    y = y + projected

    # LayerNorm over last dim, single-pass statistics (var clamped >= 0)
    p = y.shape[-1]
    inv_p = 1.0 / p
    s = jnp.sum(y, axis=-1, keepdims=True)
    s2 = jnp.sum(y * y, axis=-1, keepdims=True)
    mean = s * inv_p
    var = jnp.maximum(s2 * inv_p - mean * mean, 0.0)
    y_hat = (y - mean) * jax.lax.rsqrt(var + _LN_EPS)
    o_ref[...] = y_hat * gamma + beta


@functools.partial(jax.jit, static_argnames=("block_rows",))
def projection_head(x, w1, b1, w2, b2, gamma, beta, *, block_rows=256):
    """x: (B, E) f32; weights as (in, out); biases/LN params as (1, P). Returns (B, P) f32."""
    B, E = x.shape
    P = w1.shape[1]

    # Pack the four (1, P) parameter rows into one (4, P) input (fewer DMA descriptors,
    # less (1,P)->(8,P) tile-padding waste).
    params = jnp.concatenate([b1, b2, gamma, beta], axis=0)      # (4, P)

    # Balanced batch tiling: bound padding waste instead of TM = min(block_rows, round_up(B, 8)).
    num_tiles = pl.cdiv(B, block_rows)
    if num_tiles <= 1:
        TM = B                                        # single block == full batch dim (always legal)
    else:
        TM = ((pl.cdiv(B, num_tiles) + 7) // 8) * 8   # multiple of 8 (sublane)
    grid_steps = pl.cdiv(B, TM)                       # ragged last block handled by Pallas
    rows = grid_steps * TM

    flops = 2 * rows * E * P + 2 * rows * P * P
    transcendentals = rows * P + rows                 # erf per element + one rsqrt per row
    bytes_accessed = 4 * (B * E + E * P + P * P + 4 * P + B * P)

    return pl.pallas_call(
        _projection_head_kernel,
        out_shape=jax.ShapeDtypeStruct((B, P), jnp.float32),
        grid=(grid_steps,),
        in_specs=[
            pl.BlockSpec((TM, E), lambda i: (i, 0)),   # x: tiled over batch
            pl.BlockSpec((E, P), lambda i: (0, 0)),    # W1: VMEM-resident
            pl.BlockSpec((P, P), lambda i: (0, 0)),    # W2: VMEM-resident
            pl.BlockSpec((4, P), lambda i: (0, 0)),    # packed b1/b2/gamma/beta: resident
        ],
        out_specs=pl.BlockSpec((TM, P), lambda i: (i, 0)),
        compiler_params=pltpu.CompilerParams(
            dimension_semantics=("parallel",),         # v7x megacore; no-op on v5e/v6e
        ),
        cost_estimate=pl.CostEstimate(
            flops=flops,
            transcendentals=transcendentals,
            bytes_accessed=bytes_accessed,
        ),
    )(x, w1, w2, params)


def _reference(x, w1, b1, w2, b2, gamma, beta):
    projected = jnp.dot(x, w1, precision=_PREC) + b1[0]
    h = 0.5 * projected * (1.0 + jax.lax.erf(projected / jnp.sqrt(2.0)))
    y = jnp.dot(h, w2, precision=_PREC) + b2[0]
    y = y + projected
    mean = jnp.mean(y, axis=-1, keepdims=True)
    var = jnp.var(y, axis=-1, keepdims=True)
    return (y - mean) / jnp.sqrt(var + _LN_EPS) * gamma[0] + beta[0]


def _make_params(key, embedding_dim, projection_dim):
    kw1, kb1, kw2, kb2, kg, kb = jax.random.split(key, 6)
    lim1 = 1.0 / math.sqrt(embedding_dim)
    w1 = jax.random.uniform(kw1, (embedding_dim, projection_dim),
                            minval=-lim1, maxval=lim1, dtype=jnp.float32)
    b1 = jax.random.uniform(kb1, (1, projection_dim),
                            minval=-lim1, maxval=lim1, dtype=jnp.float32)
    lim2 = 1.0 / math.sqrt(projection_dim)
    w2 = jax.random.uniform(kw2, (projection_dim, projection_dim),
                            minval=-lim2, maxval=lim2, dtype=jnp.float32)
    b2 = jax.random.uniform(kb2, (1, projection_dim),
                            minval=-lim2, maxval=lim2, dtype=jnp.float32)
    # Non-trivial affine params so the gamma/beta path is actually exercised.
    gamma = 1.0 + 0.1 * jax.random.normal(kg, (1, projection_dim), dtype=jnp.float32)
    beta = 0.05 * jax.random.normal(kb, (1, projection_dim), dtype=jnp.float32)
    return w1, b1, w2, b2, gamma, beta


if __name__ == "__main__":
    embedding_dim, projection_dim = 32, 256
    key = jax.random.PRNGKey(0)
    kp, kx_small, kx_big = jax.random.split(key, 3)
    w1, b1, w2, b2, gamma, beta = _make_params(kp, embedding_dim, projection_dim)

    # Small shape consistent with the module's forward (single grid step).
    batch = 8
    x = jax.random.normal(kx_small, (batch, embedding_dim), dtype=jnp.float32)
    out = jax.block_until_ready(projection_head(x, w1, b1, w2, b2, gamma, beta))
    ref = _reference(x, w1, b1, w2, b2, gamma, beta)
    assert out.shape == (batch, projection_dim)
    assert jnp.allclose(out, ref, atol=1e-4, rtol=1e-4), "small-batch mismatch vs reference"

    # Larger batch exercising multi-step grid + ragged last block
    # (B=300, block_rows=256 -> TM=152, grid=2, last tile 148 rows -> masked writeback path).
    big_batch = 300
    xb = jax.random.normal(kx_big, (big_batch, embedding_dim), dtype=jnp.float32)
    outb = jax.block_until_ready(projection_head(xb, w1, b1, w2, b2, gamma, beta))
    refb = _reference(xb, w1, b1, w2, b2, gamma, beta)
    assert outb.shape == (big_batch, projection_dim)
    assert jnp.allclose(outb, refb, atol=1e-4, rtol=1e-4), "large-batch mismatch vs reference"

    print("KERNEL_OK")
</pallas_src>

<mosaic_0001>
module attributes {stable_mosaic.version = 11 : i64} {
  func.func @_projection_head_kernel(%arg0: i32, %arg1: memref<8x32xf32, #tpu.memory_space<vmem>>, %arg2: memref<32x256xf32, #tpu.memory_space<vmem>>, %arg3: memref<256x256xf32, #tpu.memory_space<vmem>>, %arg4: memref<4x256xf32, #tpu.memory_space<vmem>>, %arg5: memref<8x256xf32, #tpu.memory_space<vmem>>) attributes {dimension_semantics = [#tpu.dimension_semantics<parallel>], iteration_bounds = array<i64: 1>, scalar_prefetch = 0 : i64, scratch_operands = 0 : i64, tpu.core_type = #tpu.core_type<tc>, window_params = [{transform_indices = @transform_0, window_bounds = array<i64: 8, 32>}, {pipeline_mode = #tpu.pipeline_mode<synchronous>, transform_indices = @transform_1, window_bounds = array<i64: 32, 256>}, {pipeline_mode = #tpu.pipeline_mode<synchronous>, transform_indices = @transform_2, window_bounds = array<i64: 256, 256>}, {pipeline_mode = #tpu.pipeline_mode<synchronous>, transform_indices = @transform_3, window_bounds = array<i64: 4, 256>}, {transform_indices = @transform_4, window_bounds = array<i64: 8, 256>}]} {
    %c0 = arith.constant 0 : index
    %c0_0 = arith.constant 0 : index
    %0 = vector.load %arg1[%c0, %c0_0] : memref<8x32xf32, #tpu.memory_space<vmem>>, vector<8x32xf32>
    %c0_1 = arith.constant 0 : index
    %c0_2 = arith.constant 0 : index
    %1 = vector.load %arg4[%c0_1, %c0_2] : memref<4x256xf32, #tpu.memory_space<vmem>>, vector<1x256xf32>
    %c1 = arith.constant 1 : index
    %c0_3 = arith.constant 0 : index
    %2 = vector.load %arg4[%c1, %c0_3] : memref<4x256xf32, #tpu.memory_space<vmem>>, vector<1x256xf32>
    %c2 = arith.constant 2 : index
    %c0_4 = arith.constant 0 : index
    %3 = vector.load %arg4[%c2, %c0_4] : memref<4x256xf32, #tpu.memory_space<vmem>>, vector<1x256xf32>
    %c3 = arith.constant 3 : index
    %c0_5 = arith.constant 0 : index
    %4 = vector.load %arg4[%c3, %c0_5] : memref<4x256xf32, #tpu.memory_space<vmem>>, vector<1x256xf32>
    %c0_6 = arith.constant 0 : index
    %c0_7 = arith.constant 0 : index
    %5 = vector.load %arg2[%c0_6, %c0_7] : memref<32x256xf32, #tpu.memory_space<vmem>>, vector<32x256xf32>
    %cst = arith.constant dense<0.000000e+00> : vector<8x256xf32>
    %6 = tpu.matmul %0, %5, %cst {dimension_numbers = #tpu.dot_dimension_numbers<[1], [0], [0], [1], [0, 0, 1, 1], [], []>, precision = #tpu.contract_precision<fp32>} : vector<8x32xf32>, vector<32x256xf32>, vector<8x256xf32> -> vector<8x256xf32>
    %7 = vector.broadcast %1 : vector<1x256xf32> to vector<8x256xf32>
    %8 = arith.addf %6, %7 : vector<8x256xf32>
    %cst_8 = arith.constant 5.000000e-01 : f32
    %9 = vector.broadcast %cst_8 : f32 to vector<8x256xf32>
    %10 = arith.mulf %9, %8 : vector<8x256xf32>
    %cst_9 = arith.constant 0.707106769 : f32
    %11 = vector.broadcast %cst_9 : f32 to vector<8x256xf32>
    %12 = arith.mulf %8, %11 : vector<8x256xf32>
    %13 = math.erf %12 : vector<8x256xf32>
    %cst_10 = arith.constant 1.000000e+00 : f32
    %14 = vector.broadcast %cst_10 : f32 to vector<8x256xf32>
    %15 = arith.addf %14, %13 : vector<8x256xf32>
    %16 = arith.mulf %10, %15 : vector<8x256xf32>
    %c0_11 = arith.constant 0 : index
    %c0_12 = arith.constant 0 : index
    %17 = vector.load %arg3[%c0_11, %c0_12] : memref<256x256xf32, #tpu.memory_space<vmem>>, vector<256x256xf32>
    %cst_13 = arith.constant dense<0.000000e+00> : vector<8x256xf32>
    %18 = tpu.matmul %16, %17, %cst_13 {dimension_numbers = #tpu.dot_dimension_numbers<[1], [0], [0], [1], [0, 0, 1, 1], [], []>, precision = #tpu.contract_precision<fp32>} : vector<8x256xf32>, vector<256x256xf32>, vector<8x256xf32> -> vector<8x256xf32>
    %19 = vector.broadcast %2 : vector<1x256xf32> to vector<8x256xf32>
    %20 = arith.addf %18, %19 : vector<8x256xf32>
    %21 = arith.addf %20, %8 : vector<8x256xf32>
    %cst_14 = arith.constant dense<0.000000e+00> : vector<8xf32>
    %22 = vector.multi_reduction <add>, %21, %cst_14 [1] : vector<8x256xf32> to vector<8xf32>
    %23 = vector.shape_cast %22 : vector<8xf32> to vector<8x1xf32>
    %24 = arith.mulf %21, %21 : vector<8x256xf32>
    %cst_15 = arith.constant dense<0.000000e+00> : vector<8xf32>
    %25 = vector.multi_reduction <add>, %24, %cst_15 [1] : vector<8x256xf32> to vector<8xf32>
    %26 = vector.shape_cast %25 : vector<8xf32> to vector<8x1xf32>
    %cst_16 = arith.constant 3.906250e-03 : f32
    %27 = vector.broadcast %cst_16 : f32 to vector<8x1xf32>
    %28 = arith.mulf %23, %27 : vector<8x1xf32>
    %cst_17 = arith.constant 3.906250e-03 : f32
    %29 = vector.broadcast %cst_17 : f32 to vector<8x1xf32>
    %30 = arith.mulf %26, %29 : vector<8x1xf32>
    %31 = arith.mulf %28, %28 : vector<8x1xf32>
    %32 = arith.subf %30, %31 : vector<8x1xf32>
    %cst_18 = arith.constant 0.000000e+00 : f32
    %33 = vector.broadcast %cst_18 : f32 to vector<8x1xf32>
    %34 = arith.maximumf %32, %33 : vector<8x1xf32>
    %35 = vector.broadcast %28 : vector<8x1xf32> to vector<8x256xf32>
    %36 = arith.subf %21, %35 : vector<8x256xf32>
    %cst_19 = arith.constant 9.99999974E-6 : f32
    %37 = vector.broadcast %cst_19 : f32 to vector<8x1xf32>
    %38 = arith.addf %34, %37 : vector<8x1xf32>
    %39 = math.rsqrt %38 : vector<8x1xf32>
    %40 = vector.broadcast %39 : vector<8x1xf32> to vector<8x256xf32>
    %41 = arith.mulf %36, %40 : vector<8x256xf32>
    %42 = vector.broadcast %3 : vector<1x256xf32> to vector<8x256xf32>
    %43 = arith.mulf %41, %42 : vector<8x256xf32>
    %44 = vector.broadcast %4 : vector<1x256xf32> to vector<8x256xf32>
    %45 = arith.addf %43, %44 : vector<8x256xf32>
    %c0_20 = arith.constant 0 : index
    %c0_21 = arith.constant 0 : index
    %46 = vector.load %arg5[%c0_20, %c0_21] : memref<8x256xf32, #tpu.memory_space<vmem>>, vector<8x256xf32>
    tpu.vector_store %arg5[%c0_20, %c0_21], %45 {strides = array<i32>} : memref<8x256xf32, #tpu.memory_space<vmem>>, vector<8x256xf32>,
    return
  }
  func.func @transform_0(%arg0: i32) -> (i32, i32) {
    %c0_i32 = arith.constant 0 : i32
    %c0_i32_0 = arith.constant 0 : i32
    return %arg0, %c0_i32 : i32, i32
  }
  func.func @transform_1(%arg0: i32) -> (i32, i32) {
    %c0_i32 = arith.constant 0 : i32
    %c0_i32_0 = arith.constant 0 : i32
    %c0_i32_1 = arith.constant 0 : i32
    return %c0_i32, %c0_i32_0 : i32, i32
  }
  func.func @transform_2(%arg0: i32) -> (i32, i32) {
    %c0_i32 = arith.constant 0 : i32
    %c0_i32_0 = arith.constant 0 : i32
    %c0_i32_1 = arith.constant 0 : i32
    return %c0_i32, %c0_i32_0 : i32, i32
  }
  func.func @transform_3(%arg0: i32) -> (i32, i32) {
    %c0_i32 = arith.constant 0 : i32
    %c0_i32_0 = arith.constant 0 : i32
    %c0_i32_1 = arith.constant 0 : i32
    return %c0_i32, %c0_i32_0 : i32, i32
  }
  func.func @transform_4(%arg0: i32) -> (i32, i32) {
    %c0_i32 = arith.constant 0 : i32
    %c0_i32_0 = arith.constant 0 : i32
    return %arg0, %c0_i32 : i32, i32
  }
}

</mosaic_0001>

<llo_original>
// kernel: projection_head.1
$region0: #{projection_head.1}
  #allocation0 [shape = 'u32[]', space=smem, size = 0x4, offset = 0x4, fixed_abs, tag = 'smem constant byte address 0x4 - core index']
  #allocation1 [shape = 'u32[72,128]{1,0:T(1,128)}', space=vmem, size = 0x9000, scoped, tag = 'internal scratch']
  %s0 = inlined_call_operand.vmem [shape: f32[8,32], index: 0, kind: input, shape index: {}]
  %s1 = inlined_call_operand.hbm [shape: f32[32,256], index: 1, kind: input, shape index: {}]
  %s2 = inlined_call_operand.hbm [shape: f32[256,256], index: 2, kind: input, shape index: {}]
  %s3 = inlined_call_operand.vmem [shape: f32[4,256], index: 3, kind: input, shape index: {}]
  %s4 = inlined_call_operand.hbm [shape: f32[8,256], index: 4, kind: output, shape index: {}]
  %s5 = sld [smem:[#allocation0]]
  $region34: #{projection_head.1} parent=0
    _
  %s7 = ssub.s32 1, %s5
  %s8 = scalar_select 0, %s7, %s5
  $region1: #{projection_head.1} parent=0
    #allocation2 [shape = 'u8[32768]{0}', space=vmem, size = 0x8000, scoped, tag = 'input window, operand 1, single buffered']
    #allocation3 [shape = 's32[1]{0}', space=sflag, size = 0x4, scoped, tag = 'scoped memory for projection_head.1']
    #allocation4 [shape = 's32[1]{0}', space=sflag, size = 0x4, scoped, tag = 'scoped memory for projection_head.1']
    #allocation5 [shape = 'u8[262144]{0}', space=vmem, size = 0x40000, scoped, tag = 'input window, operand 2, single buffered']
    #allocation6 [shape = 's32[1]{0}', space=sflag, size = 0x4, scoped, tag = 'scoped memory for projection_head.1']
    #allocation7 [shape = 'u8[8192]{0}', space=vmem, size = 0x2000, scoped, tag = 'output window, operand 0, single buffered']
    %9 = vsyncpa [#allocation3], 0
    %10 = vsyncpa [#allocation6], 0
    %11 = vsyncpa [#allocation4], 0
    // Predicated region
    $region2: #{projection_head.1} parent=1 // pred_check
      _
    $region3: #{projection_head.1} parent=1 // pred_check_branch
      %13 = sbr.rel (0) target = $region5
    $region4: #{projection_head.1} parent=1 // pred_region
      _
    $region5: #{projection_head.1} parent=1 // pred_fallthru
      _
    // Predicated region
    $region6: #{projection_head.1} parent=1 // pred_check
      _
    $region7: #{projection_head.1} parent=1 // pred_check_branch
      %15 = sbr.rel (0) target = $region9
    $region8: #{projection_head.1} parent=1 // pred_region
      %17 = vsyncadd [#allocation3], 0
      %s18 = sshll.u32 %s1, 4
      %s19 = int_to_ptr.hbm [resolvable:$true] %s18
      %s20 = sshll.u32 [#allocation2], 4
      %s21 = int_to_ptr.vmem [resolvable:$true] %s20
      %26 = dma.hbm_to_vmem [thread:$0]  %s19, 1024, %s21, [#allocation3], 256, 256, 16
    $region9: #{projection_head.1} parent=1 // pred_fallthru
      _
    // Predicated region
    $region10: #{projection_head.1} parent=1 // pred_check
      _
    $region11: #{projection_head.1} parent=1 // pred_check_branch
      %28 = sbr.rel (0) target = $region13
    $region12: #{projection_head.1} parent=1 // pred_region
      %30 = vsyncadd [#allocation6], 0
      %s31 = sshll.u32 %s2, 4
      %s32 = int_to_ptr.hbm [resolvable:$true] %s31
      %s33 = sshll.u32 [#allocation5], 4
      %s34 = int_to_ptr.vmem [resolvable:$true] %s33
      %39 = dma.hbm_to_vmem [thread:$0]  %s32, 8192, %s34, [#allocation6], 256, 256, 16
    $region13: #{projection_head.1} parent=1 // pred_fallthru
      _
    // Predicated region
    $region14: #{projection_head.1} parent=1 // pred_check
      _
    $region15: #{projection_head.1} parent=1 // pred_check_branch
      %41 = sbr.rel (0) target = $region17
    $region16: #{projection_head.1} parent=1 // pred_region
      _
    $region17: #{projection_head.1} parent=1 // pred_fallthru
      _
    // Predicated region
    $region18: #{projection_head.1} parent=1 // pred_check
      _
    $region19: #{projection_head.1} parent=1 // pred_check_branch
      %43 = sbr.rel (0) target = $region21
    $region20: #{projection_head.1} parent=1 // pred_region
      %45 = dma.done [#allocation3], 1024
    $region21: #{projection_head.1} parent=1 // pred_fallthru
      _
    // Predicated region
    $region22: #{projection_head.1} parent=1 // pred_check
      _
    $region23: #{projection_head.1} parent=1 // pred_check_branch
      %47 = sbr.rel (0) target = $region25
    $region24: #{projection_head.1} parent=1 // pred_region
      %49 = dma.done [#allocation6], 8192
    $region25: #{projection_head.1} parent=1 // pred_fallthru
      _
    %v50 = vld [vmem:[%s0] sm:$0xff]
    %v51 = vld [vmem:[%s3] ss:$4 sm:$0x3]
    %s52 = scalar_lea.vmem %s3, 1
    %v53 = vld [vmem:[%s52] ss:$4 sm:$0x3]
    %s54 = scalar_lea.vmem %s3, 2
    %v55 = vld [vmem:[%s54] ss:$4 sm:$0x3]
    %s56 = scalar_lea.vmem %s3, 3
    %v57 = vld [vmem:[%s56] ss:$4 sm:$0x3]
    %v58 = vld [vmem:[#allocation2] sm:$0xff]
    %v59 = vld [vmem:[#allocation2 + $0x8] sm:$0xff]
    %v60 = vld [vmem:[#allocation2 + $0x10] sm:$0xff]
    %v61 = vld [vmem:[#allocation2 + $0x18] sm:$0xff]
    %v62 = vld [vmem:[#allocation2 + $0x20] sm:$0xff]
    %v63 = vld [vmem:[#allocation2 + $0x28] sm:$0xff]
    %v64 = vld [vmem:[#allocation2 + $0x30] sm:$0xff]
    %v65 = vld [vmem:[#allocation2 + $0x38] sm:$0xff]
    %v67 = vperm.slane %v51, 0
    %v68 = vperm.slane %v51, 1
    %vm71 = vcmask 261120
    %v73 = vsel %vm71, %v50, 0
    %75 = vmatpush.msra.mxu0 0.0
    %76 = vmatpush.msra.mxu0 0.0
    %77 = vmatpush.msra.mxu0 0.0
    %78 = vmatpush.msra.mxu0 0.0
    %79 = vmatpush.msra.mxu0 0.0
    %80 = vmatpush.msra.mxu0 0.0
    %81 = vmatpush.msra.mxu0 0.0
    %82 = vmatpush.msra.mxu0 0.0
    %83 = vmatpush.msra.mxu0 0.0
    %84 = vmatpush.msra.mxu0 0.0
    %85 = vmatpush.msra.mxu0 0.0
    %86 = vmatpush.msra.mxu0 0.0
    %v87 = vand.u32 %v64, 4294901760
    %88 = vmatpush.msra.mxu0 %v87
    %v89 = vand.u32 %v62, 4294901760
    %90 = vmatpush.msra.mxu0 %v89
    %v91 = vand.u32 %v60, 4294901760
    %92 = vmatpush.msra.mxu0 %v91
    %v93 = vand.u32 %v58, 4294901760
    %94 = vmatpush.msra.mxu0 %v93
    %v95 = vand.u32 %v73, 4294901760
    %v96 = vsub.f32 %v73, %v95
    %v97 = vand.u32 %v96, 4294901760
    %v98 = vsub.f32 %v96, %v97
    %v99 = vand.u32 %v98, 4294901760
    %100 = vmatmul.f32.gmra.mxu0 %v99
    %v101 = vpop.f32.mrf.mxu0
    %v102 = vadd.f32 %v67, %v101
    %103 = vdwg.mxu0
    %104 = vmatpush.msra.mxu0 0.0
    %105 = vmatpush.msra.mxu0 0.0
    %106 = vmatpush.msra.mxu0 0.0
    %107 = vmatpush.msra.mxu0 0.0
    %108 = vmatpush.msra.mxu0 0.0
    %109 = vmatpush.msra.mxu0 0.0
    %110 = vmatpush.msra.mxu0 0.0
    %111 = vmatpush.msra.mxu0 0.0
    %112 = vmatpush.msra.mxu0 0.0
    %113 = vmatpush.msra.mxu0 0.0
    %114 = vmatpush.msra.mxu0 0.0
    %115 = vmatpush.msra.mxu0 0.0
    %v116 = vand.u32 %v64, 4294901760
    %v117 = vsub.f32 %v64, %v116
    %v118 = vand.u32 %v117, 4294901760
    %v119 = vsub.f32 %v117, %v118
    %v120 = vand.u32 %v119, 4294901760
    %121 = vmatpush.msra.mxu0 %v120
    %v122 = vand.u32 %v62, 4294901760
    %v123 = vsub.f32 %v62, %v122
    %v124 = vand.u32 %v123, 4294901760
    %v125 = vsub.f32 %v123, %v124
    %v126 = vand.u32 %v125, 4294901760
    %127 = vmatpush.msra.mxu0 %v126
    %v128 = vand.u32 %v60, 4294901760
    %v129 = vsub.f32 %v60, %v128
    %v130 = vand.u32 %v129, 4294901760
    %v131 = vsub.f32 %v129, %v130
    %v132 = vand.u32 %v131, 4294901760
    %133 = vmatpush.msra.mxu0 %v132
    %v134 = vand.u32 %v58, 4294901760
    %v135 = vsub.f32 %v58, %v134
    %v136 = vand.u32 %v135, 4294901760
    %v137 = vsub.f32 %v135, %v136
    %v138 = vand.u32 %v137, 4294901760
    %139 = vmatpush.msra.mxu0 %v138
    %v140 = vand.u32 %v73, 4294901760
    %141 = vmatmul.f32.gmra.mxu0 %v140
    %v142 = vpop.f32.mrf.mxu0
    %v143 = vadd.f32 %v102, %v142
    %144 = vdwg.mxu0
    %145 = vmatpush.msra.mxu0 0.0
    %146 = vmatpush.msra.mxu0 0.0
    %147 = vmatpush.msra.mxu0 0.0
    %148 = vmatpush.msra.mxu0 0.0
    %149 = vmatpush.msra.mxu0 0.0
    %150 = vmatpush.msra.mxu0 0.0
    %151 = vmatpush.msra.mxu0 0.0
    %152 = vmatpush.msra.mxu0 0.0
    %153 = vmatpush.msra.mxu0 0.0
    %154 = vmatpush.msra.mxu0 0.0
    %155 = vmatpush.msra.mxu0 0.0
    %156 = vmatpush.msra.mxu0 0.0
    %v157 = vand.u32 %v64, 4294901760
    %v158 = vsub.f32 %v64, %v157
    %159 = vmatpush.msra.mxu0 %v158
    %v160 = vand.u32 %v62, 4294901760
    %v161 = vsub.f32 %v62, %v160
    %162 = vmatpush.msra.mxu0 %v161
    %v163 = vand.u32 %v60, 4294901760
    %v164 = vsub.f32 %v60, %v163
    %165 = vmatpush.msra.mxu0 %v164
    %v166 = vand.u32 %v58, 4294901760
    %v167 = vsub.f32 %v58, %v166
    %168 = vmatpush.msra.mxu0 %v167
    %v169 = vand.u32 %v73, 4294901760
    %v170 = vsub.f32 %v73, %v169
    %171 = vmatmul.f32.gmra.mxu0 %v170
    %v172 = vpop.f32.mrf.mxu0
    %v173 = vadd.f32 %v143, %v172
    %174 = vdwg.mxu0
    %175 = vmatpush.msra.mxu0 0.0
    %176 = vmatpush.msra.mxu0 0.0
    %177 = vmatpush.msra.mxu0 0.0
    %178 = vmatpush.msra.mxu0 0.0
    %179 = vmatpush.msra.mxu0 0.0
    %180 = vmatpush.msra.mxu0 0.0
    %181 = vmatpush.msra.mxu0 0.0
    %182 = vmatpush.msra.mxu0 0.0
    %183 = vmatpush.msra.mxu0 0.0
    %184 = vmatpush.msra.mxu0 0.0
    %185 = vmatpush.msra.mxu0 0.0
    %186 = vmatpush.msra.mxu0 0.0
    %v187 = vand.u32 %v64, 4294901760
    %188 = vmatpush.msra.mxu0 %v187
    %v189 = vand.u32 %v62, 4294901760
    %190 = vmatpush.msra.mxu0 %v189
    %v191 = vand.u32 %v60, 4294901760
    %192 = vmatpush.msra.mxu0 %v191
    %v193 = vand.u32 %v58, 4294901760
    %194 = vmatpush.msra.mxu0 %v193
    %v195 = vand.u32 %v73, 4294901760
    %v196 = vsub.f32 %v73, %v195
    %v197 = vand.u32 %v196, 4294901760
    %198 = vmatmul.f32.gmra.mxu0 %v197
    %v199 = vpop.f32.mrf.mxu0
    %v200 = vadd.f32 %v173, %v199
    %201 = vdwg.mxu0
    %202 = vmatpush.msra.mxu0 0.0
    %203 = vmatpush.msra.mxu0 0.0
    %204 = vmatpush.msra.mxu0 0.0
    %205 = vmatpush.msra.mxu0 0.0
    %206 = vmatpush.msra.mxu0 0.0
    %207 = vmatpush.msra.mxu0 0.0
    %208 = vmatpush.msra.mxu0 0.0
    %209 = vmatpush.msra.mxu0 0.0
    %210 = vmatpush.msra.mxu0 0.0
    %211 = vmatpush.msra.mxu0 0.0
    %212 = vmatpush.msra.mxu0 0.0
    %213 = vmatpush.msra.mxu0 0.0
    %v214 = vand.u32 %v64, 4294901760
    %v215 = vsub.f32 %v64, %v214
    %v216 = vand.u32 %v215, 4294901760
    %217 = vmatpush.msra.mxu0 %v216
    %v218 = vand.u32 %v62, 4294901760
    %v219 = vsub.f32 %v62, %v218
    %v220 = vand.u32 %v219, 4294901760
    %221 = vmatpush.msra.mxu0 %v220
    %v222 = vand.u32 %v60, 4294901760
    %v223 = vsub.f32 %v60, %v222
    %v224 = vand.u32 %v223, 4294901760
    %225 = vmatpush.msra.mxu0 %v224
    %v226 = vand.u32 %v58, 4294901760
    %v227 = vsub.f32 %v58, %v226
    %v228 = vand.u32 %v227, 4294901760
    %229 = vmatpush.msra.mxu0 %v228
    %v230 = vand.u32 %v73, 4294901760
    %231 = vmatmul.f32.gmra.mxu0 %v230
    %v232 = vpop.f32.mrf.mxu0
    %v233 = vadd.f32 %v200, %v232
    %234 = vdwg.mxu0
    %235 = vmatpush.msra.mxu0 0.0
    %236 = vmatpush.msra.mxu0 0.0
    %237 = vmatpush.msra.mxu0 0.0
    %238 = vmatpush.msra.mxu0 0.0
    %239 = vmatpush.msra.mxu0 0.0
    %240 = vmatpush.msra.mxu0 0.0
    %241 = vmatpush.msra.mxu0 0.0
    %242 = vmatpush.msra.mxu0 0.0
    %243 = vmatpush.msra.mxu0 0.0
    %244 = vmatpush.msra.mxu0 0.0
    %245 = vmatpush.msra.mxu0 0.0
    %246 = vmatpush.msra.mxu0 0.0
    %v247 = vand.u32 %v64, 4294901760
    %248 = vmatpush.msra.mxu0 %v247
    %v249 = vand.u32 %v62, 4294901760
    %250 = vmatpush.msra.mxu0 %v249
    %v251 = vand.u32 %v60, 4294901760
    %252 = vmatpush.msra.mxu0 %v251
    %v253 = vand.u32 %v58, 4294901760
    %254 = vmatpush.msra.mxu0 %v253
    %v255 = vand.u32 %v73, 4294901760
    %256 = vmatmul.f32.gmra.mxu0 %v255
    %v257 = vpop.f32.mrf.mxu0
    %v258 = vadd.f32 %v233, %v257
    %259 = vdwg.mxu0
    %260 = vmatpush.msra.mxu0 0.0
    %261 = vmatpush.msra.mxu0 0.0
    %262 = vmatpush.msra.mxu0 0.0
    %263 = vmatpush.msra.mxu0 0.0
    %264 = vmatpush.msra.mxu0 0.0
    %265 = vmatpush.msra.mxu0 0.0
    %266 = vmatpush.msra.mxu0 0.0
    %267 = vmatpush.msra.mxu0 0.0
    %268 = vmatpush.msra.mxu0 0.0
    %269 = vmatpush.msra.mxu0 0.0
    %270 = vmatpush.msra.mxu0 0.0
    %271 = vmatpush.msra.mxu0 0.0
    %v272 = vand.u32 %v65, 4294901760
    %273 = vmatpush.msra.mxu0 %v272
    %v274 = vand.u32 %v63, 4294901760
    %275 = vmatpush.msra.mxu0 %v274
    %v276 = vand.u32 %v61, 4294901760
    %277 = vmatpush.msra.mxu0 %v276
    %v278 = vand.u32 %v59, 4294901760
    %279 = vmatpush.msra.mxu0 %v278
    %v280 = vand.u32 %v73, 4294901760
    %v281 = vsub.f32 %v73, %v280
    %v282 = vand.u32 %v281, 4294901760
    %v283 = vsub.f32 %v281, %v282
    %v284 = vand.u32 %v283, 4294901760
    %285 = vmatmul.f32.gmra.mxu0 %v284
    %v286 = vpop.f32.mrf.mxu0
    %v287 = vadd.f32 %v68, %v286
    %288 = vdwg.mxu0
    %289 = vmatpush.msra.mxu0 0.0
    %290 = vmatpush.msra.mxu0 0.0
    %291 = vmatpush.msra.mxu0 0.0
    %292 = vmatpush.msra.mxu0 0.0
    %293 = vmatpush.msra.mxu0 0.0
    %294 = vmatpush.msra.mxu0 0.0
    %295 = vmatpush.msra.mxu0 0.0
    %296 = vmatpush.msra.mxu0 0.0
    %297 = vmatpush.msra.mxu0 0.0
    %298 = vmatpush.msra.mxu0 0.0
    %299 = vmatpush.msra.mxu0 0.0
    %300 = vmatpush.msra.mxu0 0.0
    %v301 = vand.u32 %v65, 4294901760
    %v302 = vsub.f32 %v65, %v301
    %v303 = vand.u32 %v302, 4294901760
    %v304 = vsub.f32 %v302, %v303
    %v305 = vand.u32 %v304, 4294901760
    %306 = vmatpush.msra.mxu0 %v305
    %v307 = vand.u32 %v63, 4294901760
    %v308 = vsub.f32 %v63, %v307
    %v309 = vand.u32 %v308, 4294901760
    %v310 = vsub.f32 %v308, %v309
    %v311 = vand.u32 %v310, 4294901760
    %312 = vmatpush.msra.mxu0 %v311
    %v313 = vand.u32 %v61, 4294901760
    %v314 = vsub.f32 %v61, %v313
    %v315 = vand.u32 %v314, 4294901760
    %v316 = vsub.f32 %v314, %v315
    %v317 = vand.u32 %v316, 4294901760
    %318 = vmatpush.msra.mxu0 %v317
    %v319 = vand.u32 %v59, 4294901760
    %v320 = vsub.f32 %v59, %v319
    %v321 = vand.u32 %v320, 4294901760
    %v322 = vsub.f32 %v320, %v321
    %v323 = vand.u32 %v322, 4294901760
    %324 = vmatpush.msra.mxu0 %v323
    %v325 = vand.u32 %v73, 4294901760
    %326 = vmatmul.f32.gmra.mxu0 %v325
    %v327 = vpop.f32.mrf.mxu0
    %v328 = vadd.f32 %v287, %v327
    %329 = vdwg.mxu0
    %330 = vmatpush.msra.mxu0 0.0
    %331 = vmatpush.msra.mxu0 0.0
    %332 = vmatpush.msra.mxu0 0.0
    %333 = vmatpush.msra.mxu0 0.0
    %334 = vmatpush.msra.mxu0 0.0
    %335 = vmatpush.msra.mxu0 0.0
    %336 = vmatpush.msra.mxu0 0.0
    %337 = vmatpush.msra.mxu0 0.0
    %338 = vmatpush.msra.mxu0 0.0
    %339 = vmatpush.msra.mxu0 0.0
    %340 = vmatpush.msra.mxu0 0.0
    %341 = vmatpush.msra.mxu0 0.0
    %v342 = vand.u32 %v65, 4294901760
    %v343 = vsub.f32 %v65, %v342
    %344 = vmatpush.msra.mxu0 %v343
    %v345 = vand.u32 %v63, 4294901760
    %v346 = vsub.f32 %v63, %v345
    %347 = vmatpush.msra.mxu0 %v346
    %v348 = vand.u32 %v61, 4294901760
    %v349 = vsub.f32 %v61, %v348
    %350 = vmatpush.msra.mxu0 %v349
    %v351 = vand.u32 %v59, 4294901760
    %v352 = vsub.f32 %v59, %v351
    %353 = vmatpush.msra.mxu0 %v352
    %v354 = vand.u32 %v73, 4294901760
    %v355 = vsub.f32 %v73, %v354
    %356 = vmatmul.f32.gmra.mxu0 %v355
    %v357 = vpop.f32.mrf.mxu0
    %v358 = vadd.f32 %v328, %v357
    %359 = vdwg.mxu0
    %360 = vmatpush.msra.mxu0 0.0
    %361 = vmatpush.msra.mxu0 0.0
    %362 = vmatpush.msra.mxu0 0.0
    %363 = vmatpush.msra.mxu0 0.0
    %364 = vmatpush.msra.mxu0 0.0
    %365 = vmatpush.msra.mxu0 0.0
    %366 = vmatpush.msra.mxu0 0.0
    %367 = vmatpush.msra.mxu0 0.0
    %368 = vmatpush.msra.mxu0 0.0
    %369 = vmatpush.msra.mxu0 0.0
    %370 = vmatpush.msra.mxu0 0.0
    %371 = vmatpush.msra.mxu0 0.0
    %v372 = vand.u32 %v65, 4294901760
    %373 = vmatpush.msra.mxu0 %v372
    %v374 = vand.u32 %v63, 4294901760
    %375 = vmatpush.msra.mxu0 %v374
    %v376 = vand.u32 %v61, 4294901760
    %377 = vmatpush.msra.mxu0 %v376
    %v378 = vand.u32 %v59, 4294901760
    %379 = vmatpush.msra.mxu0 %v378
    %v380 = vand.u32 %v73, 4294901760
    %v381 = vsub.f32 %v73, %v380
    %v382 = vand.u32 %v381, 4294901760
    %383 = vmatmul.f32.gmra.mxu0 %v382
    %v384 = vpop.f32.mrf.mxu0
    %v385 = vadd.f32 %v358, %v384
    %386 = vdwg.mxu0
    %387 = vmatpush.msra.mxu0 0.0
    %388 = vmatpush.msra.mxu0 0.0
    %389 = vmatpush.msra.mxu0 0.0
    %390 = vmatpush.msra.mxu0 0.0
    %391 = vmatpush.msra.mxu0 0.0
    %392 = vmatpush.msra.mxu0 0.0
    %393 = vmatpush.msra.mxu0 0.0
    %394 = vmatpush.msra.mxu0 0.0
    %395 = vmatpush.msra.mxu0 0.0
    %396 = vmatpush.msra.mxu0 0.0
    %397 = vmatpush.msra.mxu0 0.0
    %398 = vmatpush.msra.mxu0 0.0
    %v399 = vand.u32 %v65, 4294901760
    %v400 = vsub.f32 %v65, %v399
    %v401 = vand.u32 %v400, 4294901760
    %402 = vmatpush.msra.mxu0 %v401
    %v403 = vand.u32 %v63, 4294901760
    %v404 = vsub.f32 %v63, %v403
    %v405 = vand.u32 %v404, 4294901760
    %406 = vmatpush.msra.mxu0 %v405
    %v407 = vand.u32 %v61, 4294901760
    %v408 = vsub.f32 %v61, %v407
    %v409 = vand.u32 %v408, 4294901760
    %410 = vmatpush.msra.mxu0 %v409
    %v411 = vand.u32 %v59, 4294901760
    %v412 = vsub.f32 %v59, %v411
    %v413 = vand.u32 %v412, 4294901760
    %414 = vmatpush.msra.mxu0 %v413
    %v415 = vand.u32 %v73, 4294901760
    %416 = vmatmul.f32.gmra.mxu0 %v415
    %v417 = vpop.f32.mrf.mxu0
    %v418 = vadd.f32 %v385, %v417
    %419 = vdwg.mxu0
    %420 = vmatpush.msra.mxu0 0.0
    %421 = vmatpush.msra.mxu0 0.0
    %422 = vmatpush.msra.mxu0 0.0
    %423 = vmatpush.msra.mxu0 0.0
    %424 = vmatpush.msra.mxu0 0.0
    %425 = vmatpush.msra.mxu0 0.0
    %426 = vmatpush.msra.mxu0 0.0
    %427 = vmatpush.msra.mxu0 0.0
    %428 = vmatpush.msra.mxu0 0.0
    %429 = vmatpush.msra.mxu0 0.0
    %430 = vmatpush.msra.mxu0 0.0
    %431 = vmatpush.msra.mxu0 0.0
    %v432 = vand.u32 %v65, 4294901760
    %433 = vmatpush.msra.mxu0 %v432
    %v434 = vand.u32 %v63, 4294901760
    %435 = vmatpush.msra.mxu0 %v434
    %v436 = vand.u32 %v61, 4294901760
    %437 = vmatpush.msra.mxu0 %v436
    %v438 = vand.u32 %v59, 4294901760
    %439 = vmatpush.msra.mxu0 %v438
    %v440 = vand.u32 %v73, 4294901760
    %441 = vmatmul.f32.gmra.mxu0 %v440
    %v442 = vpop.f32.mrf.mxu0
    %v443 = vadd.f32 %v418, %v442
    %444 = vdwg.mxu0
    %v445 = vmul.f32 %v258, 0.5
    %v446 = vmul.f32 %v443, 0.5
    %v447 = vmul.f32 %v258, 0.70710677
    %v448 = vmul.f32 %v443, 0.70710677
    %v449 = vmul.f32 %v447, %v447
    %v450 = vmin.f32 16.0, %v449
    %v451 = vmul.f32 %v450, 2.1237322e-06
    %v452 = vadd.f32 %v451, 0.00028619796
    %v453 = vmul.f32 %v450, %v452
    %v454 = vadd.f32 %v453, 0.0036580483
    %v455 = vmul.f32 %v450, %v454
    %v456 = vadd.f32 %v455, 0.05243302
    %v457 = vmul.f32 %v450, %v456
    %v458 = vadd.f32 %v457, 0.18741608
    %v459 = vmul.f32 %v450, %v458
    %v460 = vadd.f32 %v459, 1.1283791
    %v461 = vmul.f32 %v447, %v460
    %v462 = vmul.f32 %v450, 3.8918573e-05
    %v463 = vadd.f32 %v462, 0.001143296
    %v464 = vmul.f32 %v450, %v463
    %v465 = vadd.f32 %v464, 0.014752088
    %v466 = vmul.f32 %v450, %v465
    %v467 = vadd.f32 %v466, 0.112945676
    %v468 = vmul.f32 %v450, %v467
    %v469 = vadd.f32 %v468, 0.4994258
    %v470 = vmul.f32 %v450, %v469
    %v471 = vadd.f32 %v470, 1.0
    %v472 = vrcp.pop %v471
    %v473 = vmul.f32 %v471, %v472
    %v474 = vsub.f32 1.0, %v473
    %v475 = vmul.f32 %v472, %v474
    %v476 = vadd.f32 %v472, %v475
    %vm477 = vweird.f32 %v471
    %vm478 = vweird.f32 %v472
    %vm479 = vmor %vm477, %vm478
    %v480 = vsel %vm479, %v472, %v476
    %v481 = vand.u32 2147483647, %v471
    %vm482 = vcmp.eq.f32.partialorder %v481, 8.507059e+37
    %v483 = vand.u32 %v471, 2147483648
    %v484 = vor.u32 1.1754944e-38, %v483
    %v485 = vsel %vm482, %v484, %v480
    %v486 = vmul.f32 %v461, %v485
    %v487 = vmin.f32 %v486, 1.0
    %v488 = vmax.f32 %v487, -1.0
    %v489 = vmul.f32 %v448, %v448
    %v490 = vmin.f32 16.0, %v489
    %v491 = vmul.f32 %v490, 2.1237322e-06
    %v492 = vadd.f32 %v491, 0.00028619796
    %v493 = vmul.f32 %v490, %v492
    %v494 = vadd.f32 %v493, 0.0036580483
    %v495 = vmul.f32 %v490, %v494
    %v496 = vadd.f32 %v495, 0.05243302
    %v497 = vmul.f32 %v490, %v496
    %v498 = vadd.f32 %v497, 0.18741608
    %v499 = vmul.f32 %v490, %v498
    %v500 = vadd.f32 %v499, 1.1283791
    %v501 = vmul.f32 %v448, %v500
    %v502 = vmul.f32 %v490, 3.8918573e-05
    %v503 = vadd.f32 %v502, 0.001143296
    %v504 = vmul.f32 %v490, %v503
    %v505 = vadd.f32 %v504, 0.014752088
    %v506 = vmul.f32 %v490, %v505
    %v507 = vadd.f32 %v506, 0.112945676
    %v508 = vmul.f32 %v490, %v507
    %v509 = vadd.f32 %v508, 0.4994258
    %v510 = vmul.f32 %v490, %v509
    %v511 = vadd.f32 %v510, 1.0
    %v512 = vrcp.pop %v511
    %v513 = vmul.f32 %v511, %v512
    %v514 = vsub.f32 1.0, %v513
    %v515 = vmul.f32 %v512, %v514
    %v516 = vadd.f32 %v512, %v515
    %vm517 = vweird.f32 %v511
    %vm518 = vweird.f32 %v512
    %vm519 = vmor %vm517, %vm518
    %v520 = vsel %vm519, %v512, %v516
    %v521 = vand.u32 2147483647, %v511
    %vm522 = vcmp.eq.f32.partialorder %v521, 8.507059e+37
    %v523 = vand.u32 %v511, 2147483648
    %v524 = vor.u32 1.1754944e-38, %v523
    %v525 = vsel %vm522, %v524, %v520
    %v526 = vmul.f32 %v501, %v525
    %v527 = vmin.f32 %v526, 1.0
    %v528 = vmax.f32 %v527, -1.0
    %v529 = vadd.f32 %v488, 1.0
    %v530 = vadd.f32 %v528, 1.0
    %v531 = vmul.f32 %v445, %v529
    %v532 = vmul.f32 %v446, %v530
    %v533 = vld [vmem:[#allocation5] sm:$0xff]
    %v534 = vld [vmem:[#allocation5 + $0x8] sm:$0xff]
    %v535 = vld [vmem:[#allocation5 + $0x10] sm:$0xff]
    %v536 = vld [vmem:[#allocation5 + $0x18] sm:$0xff]
    %v537 = vld [vmem:[#allocation5 + $0x20] sm:$0xff]
    %v538 = vld [vmem:[#allocation5 + $0x28] sm:$0xff]
    %v539 = vld [vmem:[#allocation5 + $0x30] sm:$0xff]
    %v540 = vld [vmem:[#allocation5 + $0x38] sm:$0xff]
    %v541 = vld [vmem:[#allocation5 + $0x40] sm:$0xff]
    %v542 = vld [vmem:[#allocation5 + $0x48] sm:$0xff]
    %v543 = vld [vmem:[#allocation5 + $0x50] sm:$0xff]
    %v544 = vld [vmem:[#allocation5 + $0x58] sm:$0xff]
    %v545 = vld [vmem:[#allocation5 + $0x60] sm:$0xff]
    %v546 = vld [vmem:[#allocation5 + $0x68] sm:$0xff]
    %v547 = vld [vmem:[#allocation5 + $0x70] sm:$0xff]
    %v548 = vld [vmem:[#allocation5 + $0x78] sm:$0xff]
    %v549 = vld [vmem:[#allocation5 + $0x80] sm:$0xff]
    %v550 = vld [vmem:[#allocation5 + $0x88] sm:$0xff]
    %v551 = vld [vmem:[#allocation5 + $0x90] sm:$0xff]
    %v552 = vld [vmem:[#allocation5 + $0x98] sm:$0xff]
    %v553 = vld [vmem:[#allocation5 + $0xa0] sm:$0xff]
    %v554 = vld [vmem:[#allocation5 + $0xa8] sm:$0xff]
    %v555 = vld [vmem:[#allocation5 + $0xb0] sm:$0xff]
    %v556 = vld [vmem:[#allocation5 + $0xb8] sm:$0xff]
    %v557 = vld [vmem:[#allocation5 + $0xc0] sm:$0xff]
    %v558 = vld [vmem:[#allocation5 + $0xc8] sm:$0xff]
    %v559 = vld [vmem:[#allocation5 + $0xd0] sm:$0xff]
    %v560 = vld [vmem:[#allocation5 + $0xd8] sm:$0xff]
    %v561 = vld [vmem:[#allocation5 + $0xe0] sm:$0xff]
    %v562 = vld [vmem:[#allocation5 + $0xe8] sm:$0xff]
    %v563 = vld [vmem:[#allocation5 + $0xf0] sm:$0xff]
    %v564 = vld [vmem:[#allocation5 + $0xf8] sm:$0xff]
    %v565 = vld [vmem:[#allocation5 + $0x100] sm:$0xff]
    %v566 = vld [vmem:[#allocation5 + $0x108] sm:$0xff]
    %v567 = vld [vmem:[#allocation5 + $0x110] sm:$0xff]
    %v568 = vld [vmem:[#allocation5 + $0x118] sm:$0xff]
    %v569 = vld [vmem:[#allocation5 + $0x120] sm:$0xff]
    %v570 = vld [vmem:[#allocation5 + $0x128] sm:$0xff]
    %v571 = vld [vmem:[#allocation5 + $0x130] sm:$0xff]
    %v572 = vld [vmem:[#allocation5 + $0x138] sm:$0xff]
    %v573 = vld [vmem:[#allocation5 + $0x140] sm:$0xff]
    %v574 = vld [vmem:[#allocation5 + $0x148] sm:$0xff]
    %v575 = vld [vmem:[#allocation5 + $0x150] sm:$0xff]
    %v576 = vld [vmem:[#allocation5 + $0x158] sm:$0xff]
    %v577 = vld [vmem:[#allocation5 + $0x160] sm:$0xff]
    %v578 = vld [vmem:[#allocation5 + $0x168] sm:$0xff]
    %v579 = vld [vmem:[#allocation5 + $0x170] sm:$0xff]
    %v580 = vld [vmem:[#allocation5 + $0x178] sm:$0xff]
    %v581 = vld [vmem:[#allocation5 + $0x180] sm:$0xff]
    %v582 = vld [vmem:[#allocation5 + $0x188] sm:$0xff]
    %v583 = vld [vmem:[#allocation5 + $0x190] sm:$0xff]
    %v584 = vld [vmem:[#allocation5 + $0x198] sm:$0xff]
    %v585 = vld [vmem:[#allocation5 + $0x1a0] sm:$0xff]
    %v586 = vld [vmem:[#allocation5 + $0x1a8] sm:$0xff]
    %v587 = vld [vmem:[#allocation5 + $0x1b0] sm:$0xff]
    %v588 = vld [vmem:[#allocation5 + $0x1b8] sm:$0xff]
    %v589 = vld [vmem:[#allocation5 + $0x1c0] sm:$0xff]
    %v590 = vld [vmem:[#allocation5 + $0x1c8] sm:$0xff]
    %v591 = vld [vmem:[#allocation5 + $0x1d0] sm:$0xff]
    %v592 = vld [vmem:[#allocation5 + $0x1d8] sm:$0xff]
    %v593 = vld [vmem:[#allocation5 + $0x1e0] sm:$0xff]
    %v594 = vld [vmem:[#allocation5 + $0x1e8] sm:$0xff]
    %v595 = vld [vmem:[#allocation5 + $0x1f0] sm:$0xff]
    %v596 = vld [vmem:[#allocation5 + $0x1f8] sm:$0xff]
    %v598 = vperm.slane %v53, 0
    %v599 = vperm.slane %v53, 1
    %v602 = vand.u32 %v563, 4294901760
    %603 = vmatpush.msra.mxu0 %v602
    %v604 = vand.u32 %v561, 4294901760
    %605 = vmatpush.msra.mxu0 %v604
    %v606 = vand.u32 %v559, 4294901760
    %607 = vmatpush.msra.mxu0 %v606
    %v608 = vand.u32 %v557, 4294901760
    %609 = vmatpush.msra.mxu0 %v608
    %v610 = vand.u32 %v555, 4294901760
    %611 = vmatpush.msra.mxu0 %v610
    %v612 = vand.u32 %v553, 4294901760
    %613 = vmatpush.msra.mxu0 %v612
    %v614 = vand.u32 %v551, 4294901760
    %615 = vmatpush.msra.mxu0 %v614
    %v616 = vand.u32 %v549, 4294901760
    %617 = vmatpush.msra.mxu0 %v616
    %v618 = vand.u32 %v547, 4294901760
    %619 = vmatpush.msra.mxu0 %v618
    %v620 = vand.u32 %v545, 4294901760
    %621 = vmatpush.msra.mxu0 %v620
    %v622 = vand.u32 %v543, 4294901760
    %623 = vmatpush.msra.mxu0 %v622
    %v624 = vand.u32 %v541, 4294901760
    %625 = vmatpush.msra.mxu0 %v624
    %v626 = vand.u32 %v539, 4294901760
    %627 = vmatpush.msra.mxu0 %v626
    %v628 = vand.u32 %v537, 4294901760
    %629 = vmatpush.msra.mxu0 %v628
    %v630 = vand.u32 %v535, 4294901760
    %631 = vmatpush.msra.mxu0 %v630
    %v632 = vand.u32 %v533, 4294901760
    %633 = vmatpush.msra.mxu0 %v632
    %v634 = vand.u32 %v531, 4294901760
    %v635 = vsub.f32 %v531, %v634
    %v636 = vand.u32 %v635, 4294901760
    %v637 = vsub.f32 %v635, %v636
    %v638 = vand.u32 %v637, 4294901760
    %639 = vmatmul.f32.gmra.mxu0 %v638
    %v640 = vpop.f32.mrf.mxu0
    %v641 = vadd.f32 %v598, %v640
    %642 = vdwg.mxu0
    %v643 = vand.u32 %v563, 4294901760
    %v644 = vsub.f32 %v563, %v643
    %v645 = vand.u32 %v644, 4294901760
    %v646 = vsub.f32 %v644, %v645
    %v647 = vand.u32 %v646, 4294901760
    %648 = vmatpush.msra.mxu0 %v647
    %v649 = vand.u32 %v561, 4294901760
    %v650 = vsub.f32 %v561, %v649
    %v651 = vand.u32 %v650, 4294901760
    %v652 = vsub.f32 %v650, %v651
    %v653 = vand.u32 %v652, 4294901760
    %654 = vmatpush.msra.mxu0 %v653
    %v655 = vand.u32 %v559, 4294901760
    %v656 = vsub.f32 %v559, %v655
    %v657 = vand.u32 %v656, 4294901760
    %v658 = vsub.f32 %v656, %v657
    %v659 = vand.u32 %v658, 4294901760
    %660 = vmatpush.msra.mxu0 %v659
    %v661 = vand.u32 %v557, 4294901760
    %v662 = vsub.f32 %v557, %v661
    %v663 = vand.u32 %v662, 4294901760
    %v664 = vsub.f32 %v662, %v663
    %v665 = vand.u32 %v664, 4294901760
    %666 = vmatpush.msra.mxu0 %v665
    %v667 = vand.u32 %v555, 4294901760
    %v668 = vsub.f32 %v555, %v667
    %v669 = vand.u32 %v668, 4294901760
    %v670 = vsub.f32 %v668, %v669
    %v671 = vand.u32 %v670, 4294901760
    %672 = vmatpush.msra.mxu0 %v671
    %v673 = vand.u32 %v553, 4294901760
    %v674 = vsub.f32 %v553, %v673
    %v675 = vand.u32 %v674, 4294901760
    %v676 = vsub.f32 %v674, %v675
    %v677 = vand.u32 %v676, 4294901760
    %678 = vmatpush.msra.mxu0 %v677
    %v679 = vand.u32 %v551, 4294901760
    %v680 = vsub.f32 %v551, %v679
    %v681 = vand.u32 %v680, 4294901760
    %v682 = vsub.f32 %v680, %v681
    %v683 = vand.u32 %v682, 4294901760
    %684 = vmatpush.msra.mxu0 %v683
    %v685 = vand.u32 %v549, 4294901760
    %v686 = vsub.f32 %v549, %v685
    %v687 = vand.u32 %v686, 4294901760
    %v688 = vsub.f32 %v686, %v687
    %v689 = vand.u32 %v688, 4294901760
    %690 = vmatpush.msra.mxu0 %v689
    %v691 = vand.u32 %v547, 4294901760
    %v692 = vsub.f32 %v547, %v691
    %v693 = vand.u32 %v692, 4294901760
    %v694 = vsub.f32 %v692, %v693
    %v695 = vand.u32 %v694, 4294901760
    %696 = vmatpush.msra.mxu0 %v695
    %v697 = vand.u32 %v545, 4294901760
    %v698 = vsub.f32 %v545, %v697
    %v699 = vand.u32 %v698, 4294901760
    %v700 = vsub.f32 %v698, %v699
    %v701 = vand.u32 %v700, 4294901760
    %702 = vmatpush.msra.mxu0 %v701
    %v703 = vand.u32 %v543, 4294901760
    %v704 = vsub.f32 %v543, %v703
    %v705 = vand.u32 %v704, 4294901760
    %v706 = vsub.f32 %v704, %v705
    %v707 = vand.u32 %v706, 4294901760
    %708 = vmatpush.msra.mxu0 %v707
    %v709 = vand.u32 %v541, 4294901760
    %v710 = vsub.f32 %v541, %v709
    %v711 = vand.u32 %v710, 4294901760
    %v712 = vsub.f32 %v710, %v711
    %v713 = vand.u32 %v712, 4294901760
    %714 = vmatpush.msra.mxu0 %v713
    %v715 = vand.u32 %v539, 4294901760
    %v716 = vsub.f32 %v539, %v715
    %v717 = vand.u32 %v716, 4294901760
    %v718 = vsub.f32 %v716, %v717
    %v719 = vand.u32 %v718, 4294901760
    %720 = vmatpush.msra.mxu0 %v719
    %v721 = vand.u32 %v537, 4294901760
    %v722 = vsub.f32 %v537, %v721
    %v723 = vand.u32 %v722, 4294901760
    %v724 = vsub.f32 %v722, %v723
    %v725 = vand.u32 %v724, 4294901760
    %726 = vmatpush.msra.mxu0 %v725
    %v727 = vand.u32 %v535, 4294901760
    %v728 = vsub.f32 %v535, %v727
    %v729 = vand.u32 %v728, 4294901760
    %v730 = vsub.f32 %v728, %v729
    %v731 = vand.u32 %v730, 4294901760
    %732 = vmatpush.msra.mxu0 %v731
    %v733 = vand.u32 %v533, 4294901760
    %v734 = vsub.f32 %v533, %v733
    %v735 = vand.u32 %v734, 4294901760
    %v736 = vsub.f32 %v734, %v735
    %v737 = vand.u32 %v736, 4294901760
    %738 = vmatpush.msra.mxu0 %v737
    %v739 = vand.u32 %v531, 4294901760
    %740 = vmatmul.f32.gmra.mxu0 %v739
    %v741 = vpop.f32.mrf.mxu0
    %v742 = vadd.f32 %v641, %v741
    %743 = vdwg.mxu0
    %v744 = vand.u32 %v563, 4294901760
    %v745 = vsub.f32 %v563, %v744
    %746 = vmatpush.msra.mxu0 %v745
    %v747 = vand.u32 %v561, 4294901760
    %v748 = vsub.f32 %v561, %v747
    %749 = vmatpush.msra.mxu0 %v748
    %v750 = vand.u32 %v559, 4294901760
    %v751 = vsub.f32 %v559, %v750
    %752 = vmatpush.msra.mxu0 %v751
    %v753 = vand.u32 %v557, 4294901760
    %v754 = vsub.f32 %v557, %v753
    %755 = vmatpush.msra.mxu0 %v754
    %v756 = vand.u32 %v555, 4294901760
    %v757 = vsub.f32 %v555, %v756
    %758 = vmatpush.msra.mxu0 %v757
    %v759 = vand.u32 %v553, 4294901760
    %v760 = vsub.f32 %v553, %v759
    %761 = vmatpush.msra.mxu0 %v760
    %v762 = vand.u32 %v551, 4294901760
    %v763 = vsub.f32 %v551, %v762
    %764 = vmatpush.msra.mxu0 %v763
    %v765 = vand.u32 %v549, 4294901760
    %v766 = vsub.f32 %v549, %v765
    %767 = vmatpush.msra.mxu0 %v766
    %v768 = vand.u32 %v547, 4294901760
    %v769 = vsub.f32 %v547, %v768
    %770 = vmatpush.msra.mxu0 %v769
    %v771 = vand.u32 %v545, 4294901760
    %v772 = vsub.f32 %v545, %v771
    %773 = vmatpush.msra.mxu0 %v772
    %v774 = vand.u32 %v543, 4294901760
    %v775 = vsub.f32 %v543, %v774
    %776 = vmatpush.msra.mxu0 %v775
    %v777 = vand.u32 %v541, 4294901760
    %v778 = vsub.f32 %v541, %v777
    %779 = vmatpush.msra.mxu0 %v778
    %v780 = vand.u32 %v539, 4294901760
    %v781 = vsub.f32 %v539, %v780
    %782 = vmatpush.msra.mxu0 %v781
    %v783 = vand.u32 %v537, 4294901760
    %v784 = vsub.f32 %v537, %v783
    %785 = vmatpush.msra.mxu0 %v784
    %v786 = vand.u32 %v535, 4294901760
    %v787 = vsub.f32 %v535, %v786
    %788 = vmatpush.msra.mxu0 %v787
    %v789 = vand.u32 %v533, 4294901760
    %v790 = vsub.f32 %v533, %v789
    %791 = vmatpush.msra.mxu0 %v790
    %v792 = vand.u32 %v531, 4294901760
    %v793 = vsub.f32 %v531, %v792
    %794 = vmatmul.f32.gmra.mxu0 %v793
    %v795 = vpop.f32.mrf.mxu0
    %v796 = vadd.f32 %v742, %v795
    %797 = vdwg.mxu0
    %v798 = vand.u32 %v563, 4294901760
    %799 = vmatpush.msra.mxu0 %v798
    %v800 = vand.u32 %v561, 4294901760
    %801 = vmatpush.msra.mxu0 %v800
    %v802 = vand.u32 %v559, 4294901760
    %803 = vmatpush.msra.mxu0 %v802
    %v804 = vand.u32 %v557, 4294901760
    %805 = vmatpush.msra.mxu0 %v804
    %v806 = vand.u32 %v555, 4294901760
    %807 = vmatpush.msra.mxu0 %v806
    %v808 = vand.u32 %v553, 4294901760
    %809 = vmatpush.msra.mxu0 %v808
    %v810 = vand.u32 %v551, 4294901760
    %811 = vmatpush.msra.mxu0 %v810
    %v812 = vand.u32 %v549, 4294901760
    %813 = vmatpush.msra.mxu0 %v812
    %v814 = vand.u32 %v547, 4294901760
    %815 = vmatpush.msra.mxu0 %v814
    %v816 = vand.u32 %v545, 4294901760
    %817 = vmatpush.msra.mxu0 %v816
    %v818 = vand.u32 %v543, 4294901760
    %819 = vmatpush.msra.mxu0 %v818
    %v820 = vand.u32 %v541, 4294901760
    %821 = vmatpush.msra.mxu0 %v820
    %v822 = vand.u32 %v539, 4294901760
    %823 = vmatpush.msra.mxu0 %v822
    %v824 = vand.u32 %v537, 4294901760
    %825 = vmatpush.msra.mxu0 %v824
    %v826 = vand.u32 %v535, 4294901760
    %827 = vmatpush.msra.mxu0 %v826
    %v828 = vand.u32 %v533, 4294901760
    %829 = vmatpush.msra.mxu0 %v828
    %v830 = vand.u32 %v531, 4294901760
    %v831 = vsub.f32 %v531, %v830
    %v832 = vand.u32 %v831, 4294901760
    %833 = vmatmul.f32.gmra.mxu0 %v832
    %v834 = vpop.f32.mrf.mxu0
    %v835 = vadd.f32 %v796, %v834
    %836 = vdwg.mxu0
    %v837 = vand.u32 %v563, 4294901760
    %v838 = vsub.f32 %v563, %v837
    %v839 = vand.u32 %v838, 4294901760
    %840 = vmatpush.msra.mxu0 %v839
    %v841 = vand.u32 %v561, 4294901760
    %v842 = vsub.f32 %v561, %v841
    %v843 = vand.u32 %v842, 4294901760
    %844 = vmatpush.msra.mxu0 %v843
    %v845 = vand.u32 %v559, 4294901760
    %v846 = vsub.f32 %v559, %v845
    %v847 = vand.u32 %v846, 4294901760
    %848 = vmatpush.msra.mxu0 %v847
    %v849 = vand.u32 %v557, 4294901760
    %v850 = vsub.f32 %v557, %v849
    %v851 = vand.u32 %v850, 4294901760
    %852 = vmatpush.msra.mxu0 %v851
    %v853 = vand.u32 %v555, 4294901760
    %v854 = vsub.f32 %v555, %v853
    %v855 = vand.u32 %v854, 4294901760
    %856 = vmatpush.msra.mxu0 %v855
    %v857 = vand.u32 %v553, 4294901760
    %v858 = vsub.f32 %v553, %v857
    %v859 = vand.u32 %v858, 4294901760
    %860 = vmatpush.msra.mxu0 %v859
    %v861 = vand.u32 %v551, 4294901760
    %v862 = vsub.f32 %v551, %v861
    %v863 = vand.u32 %v862, 4294901760
    %864 = vmatpush.msra.mxu0 %v863
    %v865 = vand.u32 %v549, 4294901760
    %v866 = vsub.f32 %v549, %v865
    %v867 = vand.u32 %v866, 4294901760
    %868 = vmatpush.msra.mxu0 %v867
    %v869 = vand.u32 %v547, 4294901760
    %v870 = vsub.f32 %v547, %v869
    %v871 = vand.u32 %v870, 4294901760
    %872 = vmatpush.msra.mxu0 %v871
    %v873 = vand.u32 %v545, 4294901760
    %v874 = vsub.f32 %v545, %v873
    %v875 = vand.u32 %v874, 4294901760
    %876 = vmatpush.msra.mxu0 %v875
    %v877 = vand.u32 %v543, 4294901760
    %v878 = vsub.f32 %v543, %v877
    %v879 = vand.u32 %v878, 4294901760
    %880 = vmatpush.msra.mxu0 %v879
    %v881 = vand.u32 %v541, 4294901760
    %v882 = vsub.f32 %v541, %v881
    %v883 = vand.u32 %v882, 4294901760
    %884 = vmatpush.msra.mxu0 %v883
    %v885 = vand.u32 %v539, 4294901760
    %v886 = vsub.f32 %v539, %v885
    %v887 = vand.u32 %v886, 4294901760
    %888 = vmatpush.msra.mxu0 %v887
    %v889 = vand.u32 %v537, 4294901760
    %v890 = vsub.f32 %v537, %v889
    %v891 = vand.u32 %v890, 4294901760
    %892 = vmatpush.msra.mxu0 %v891
    %v893 = vand.u32 %v535, 4294901760
    %v894 = vsub.f32 %v535, %v893
    %v895 = vand.u32 %v894, 4294901760
    %896 = vmatpush.msra.mxu0 %v895
    %v897 = vand.u32 %v533, 4294901760
    %v898 = vsub.f32 %v533, %v897
    %v899 = vand.u32 %v898, 4294901760
    %900 = vmatpush.msra.mxu0 %v899
    %v901 = vand.u32 %v531, 4294901760
    %902 = vmatmul.f32.gmra.mxu0 %v901
    %v903 = vpop.f32.mrf.mxu0
    %v904 = vadd.f32 %v835, %v903
    %905 = vdwg.mxu0
    %v906 = vand.u32 %v563, 4294901760
    %907 = vmatpush.msra.mxu0 %v906
    %v908 = vand.u32 %v561, 4294901760
    %909 = vmatpush.msra.mxu0 %v908
    %v910 = vand.u32 %v559, 4294901760
    %911 = vmatpush.msra.mxu0 %v910
    %v912 = vand.u32 %v557, 4294901760
    %913 = vmatpush.msra.mxu0 %v912
    %v914 = vand.u32 %v555, 4294901760
    %915 = vmatpush.msra.mxu0 %v914
    %v916 = vand.u32 %v553, 4294901760
    %917 = vmatpush.msra.mxu0 %v916
    %v918 = vand.u32 %v551, 4294901760
    %919 = vmatpush.msra.mxu0 %v918
    %v920 = vand.u32 %v549, 4294901760
    %921 = vmatpush.msra.mxu0 %v920
    %v922 = vand.u32 %v547, 4294901760
    %923 = vmatpush.msra.mxu0 %v922
    %v924 = vand.u32 %v545, 4294901760
    %925 = vmatpush.msra.mxu0 %v924
    %v926 = vand.u32 %v543, 4294901760
    %927 = vmatpush.msra.mxu0 %v926
    %v928 = vand.u32 %v541, 4294901760
    %929 = vmatpush.msra.mxu0 %v928
    %v930 = vand.u32 %v539, 4294901760
    %931 = vmatpush.msra.mxu0 %v930
    %v932 = vand.u32 %v537, 4294901760
    %933 = vmatpush.msra.mxu0 %v932
    %v934 = vand.u32 %v535, 4294901760
    %935 = vmatpush.msra.mxu0 %v934
    %v936 = vand.u32 %v533, 4294901760
    %937 = vmatpush.msra.mxu0 %v936
    %v938 = vand.u32 %v531, 4294901760
    %939 = vmatmul.f32.gmra.mxu0 %v938
    %v940 = vpop.f32.mrf.mxu0
    %v941 = vadd.f32 %v904, %v940
    %942 = vdwg.mxu0
    %v943 = vand.u32 %v595, 4294901760
    %944 = vmatpush.msra.mxu0 %v943
    %v945 = vand.u32 %v593, 4294901760
    %946 = vmatpush.msra.mxu0 %v945
    %v947 = vand.u32 %v591, 4294901760
    %948 = vmatpush.msra.mxu0 %v947
    %v949 = vand.u32 %v589, 4294901760
    %950 = vmatpush.msra.mxu0 %v949
    %v951 = vand.u32 %v587, 4294901760
    %952 = vmatpush.msra.mxu0 %v951
    %v953 = vand.u32 %v585, 4294901760
    %954 = vmatpush.msra.mxu0 %v953
    %v955 = vand.u32 %v583, 4294901760
    %956 = vmatpush.msra.mxu0 %v955
    %v957 = vand.u32 %v581, 4294901760
    %958 = vmatpush.msra.mxu0 %v957
    %v959 = vand.u32 %v579, 4294901760
    %960 = vmatpush.msra.mxu0 %v959
    %v961 = vand.u32 %v577, 4294901760
    %962 = vmatpush.msra.mxu0 %v961
    %v963 = vand.u32 %v575, 4294901760
    %964 = vmatpush.msra.mxu0 %v963
    %v965 = vand.u32 %v573, 4294901760
    %966 = vmatpush.msra.mxu0 %v965
    %v967 = vand.u32 %v571, 4294901760
    %968 = vmatpush.msra.mxu0 %v967
    %v969 = vand.u32 %v569, 4294901760
    %970 = vmatpush.msra.mxu0 %v969
    %v971 = vand.u32 %v567, 4294901760
    %972 = vmatpush.msra.mxu0 %v971
    %v973 = vand.u32 %v565, 4294901760
    %974 = vmatpush.msra.mxu0 %v973
    %v975 = vand.u32 %v532, 4294901760
    %v976 = vsub.f32 %v532, %v975
    %v977 = vand.u32 %v976, 4294901760
    %v978 = vsub.f32 %v976, %v977
    %v979 = vand.u32 %v978, 4294901760
    %980 = vmatmul.f32.gmra.mxu0 %v979
    %v981 = vpop.f32.mrf.mxu0
    %v982 = vadd.f32 %v941, %v981
    %983 = vdwg.mxu0
    %v984 = vand.u32 %v595, 4294901760
    %v985 = vsub.f32 %v595, %v984
    %v986 = vand.u32 %v985, 4294901760
    %v987 = vsub.f32 %v985, %v986
    %v988 = vand.u32 %v987, 4294901760
    %989 = vmatpush.msra.mxu0 %v988
    %v990 = vand.u32 %v593, 4294901760
    %v991 = vsub.f32 %v593, %v990
    %v992 = vand.u32 %v991, 4294901760
    %v993 = vsub.f32 %v991, %v992
    %v994 = vand.u32 %v993, 4294901760
    %995 = vmatpush.msra.mxu0 %v994
    %v996 = vand.u32 %v591, 4294901760
    %v997 = vsub.f32 %v591, %v996
    %v998 = vand.u32 %v997, 4294901760
    %v999 = vsub.f32 %v997, %v998
    %v1000 = vand.u32 %v999, 4294901760
    %1001 = vmatpush.msra.mxu0 %v1000
    %v1002 = vand.u32 %v589, 4294901760
    %v1003 = vsub.f32 %v589, %v1002
    %v1004 = vand.u32 %v1003, 4294901760
    %v1005 = vsub.f32 %v1003, %v1004
    %v1006 = vand.u32 %v1005, 4294901760
    %1007 = vmatpush.msra.mxu0 %v1006
    %v1008 = vand.u32 %v587, 4294901760
    %v1009 = vsub.f32 %v587, %v1008
    %v1010 = vand.u32 %v1009, 4294901760
    %v1011 = vsub.f32 %v1009, %v1010
    %v1012 = vand.u32 %v1011, 4294901760
    %1013 = vmatpush.msra.mxu0 %v1012
    %v1014 = vand.u32 %v585, 4294901760
    %v1015 = vsub.f32 %v585, %v1014
    %v1016 = vand.u32 %v1015, 4294901760
    %v1017 = vsub.f32 %v1015, %v1016
    %v1018 = vand.u32 %v1017, 4294901760
    %1019 = vmatpush.msra.mxu0 %v1018
    %v1020 = vand.u32 %v583, 4294901760
    %v1021 = vsub.f32 %v583, %v1020
    %v1022 = vand.u32 %v1021, 4294901760
    %v1023 = vsub.f32 %v1021, %v1022
    %v1024 = vand.u32 %v1023, 4294901760
    %1025 = vmatpush.msra.mxu0 %v1024
    %v1026 = vand.u32 %v581, 4294901760
    %v1027 = vsub.f32 %v581, %v1026
    %v1028 = vand.u32 %v1027, 4294901760
    %v1029 = vsub.f32 %v1027, %v1028
    %v1030 = vand.u32 %v1029, 4294901760
    %1031 = vmatpush.msra.mxu0 %v1030
    %v1032 = vand.u32 %v579, 4294901760
    %v1033 = vsub.f32 %v579, %v1032
    %v1034 = vand.u32 %v1033, 4294901760
    %v1035 = vsub.f32 %v1033, %v1034
    %v1036 = vand.u32 %v1035, 4294901760
    %1037 = vmatpush.msra.mxu0 %v1036
    %v1038 = vand.u32 %v577, 4294901760
    %v1039 = vsub.f32 %v577, %v1038
    %v1040 = vand.u32 %v1039, 4294901760
    %v1041 = vsub.f32 %v1039, %v1040
    %v1042 = vand.u32 %v1041, 4294901760
    %1043 = vmatpush.msra.mxu0 %v1042
    %v1044 = vand.u32 %v575, 4294901760
    %v1045 = vsub.f32 %v575, %v1044
    %v1046 = vand.u32 %v1045, 4294901760
    %v1047 = vsub.f32 %v1045, %v1046
    %v1048 = vand.u32 %v1047, 4294901760
    %1049 = vmatpush.msra.mxu0 %v1048
    %v1050 = vand.u32 %v573, 4294901760
    %v1051 = vsub.f32 %v573, %v1050
    %v1052 = vand.u32 %v1051, 4294901760
    %v1053 = vsub.f32 %v1051, %v1052
    %v1054 = vand.u32 %v1053, 4294901760
    %1055 = vmatpush.msra.mxu0 %v1054
    %v1056 = vand.u32 %v571, 4294901760
    %v1057 = vsub.f32 %v571, %v1056
    %v1058 = vand.u32 %v1057, 4294901760
    %v1059 = vsub.f32 %v1057, %v1058
    %v1060 = vand.u32 %v1059, 4294901760
    %1061 = vmatpush.msra.mxu0 %v1060
    %v1062 = vand.u32 %v569, 4294901760
    %v1063 = vsub.f32 %v569, %v1062
    %v1064 = vand.u32 %v1063, 4294901760
    %v1065 = vsub.f32 %v1063, %v1064
    %v1066 = vand.u32 %v1065, 4294901760
    %1067 = vmatpush.msra.mxu0 %v1066
    %v1068 = vand.u32 %v567, 4294901760
    %v1069 = vsub.f32 %v567, %v1068
    %v1070 = vand.u32 %v1069, 4294901760
    %v1071 = vsub.f32 %v1069, %v1070
    %v1072 = vand.u32 %v1071, 4294901760
    %1073 = vmatpush.msra.mxu0 %v1072
    %v1074 = vand.u32 %v565, 4294901760
    %v1075 = vsub.f32 %v565, %v1074
    %v1076 = vand.u32 %v1075, 4294901760
    %v1077 = vsub.f32 %v1075, %v1076
    %v1078 = vand.u32 %v1077, 4294901760
    %1079 = vmatpush.msra.mxu0 %v1078
    %v1080 = vand.u32 %v532, 4294901760
    %1081 = vmatmul.f32.gmra.mxu0 %v1080
    %v1082 = vpop.f32.mrf.mxu0
    %v1083 = vadd.f32 %v982, %v1082
    %1084 = vdwg.mxu0
    %v1085 = vand.u32 %v595, 4294901760
    %v1086 = vsub.f32 %v595, %v1085
    %1087 = vmatpush.msra.mxu0 %v1086
    %v1088 = vand.u32 %v593, 4294901760
    %v1089 = vsub.f32 %v593, %v1088
    %1090 = vmatpush.msra.mxu0 %v1089
    %v1091 = vand.u32 %v591, 4294901760
    %v1092 = vsub.f32 %v591, %v1091
    %1093 = vmatpush.msra.mxu0 %v1092
    %v1094 = vand.u32 %v589, 4294901760
    %v1095 = vsub.f32 %v589, %v1094
    %1096 = vmatpush.msra.mxu0 %v1095
    %v1097 = vand.u32 %v587, 4294901760
    %v1098 = vsub.f32 %v587, %v1097
    %1099 = vmatpush.msra.mxu0 %v1098
    %v1100 = vand.u32 %v585, 4294901760
    %v1101 = vsub.f32 %v585, %v1100
    %1102 = vmatpush.msra.mxu0 %v1101
    %v1103 = vand.u32 %v583, 4294901760
    %v1104 = vsub.f32 %v583, %v1103
    %1105 = vmatpush.msra.mxu0 %v1104
    %v1106 = vand.u32 %v581, 4294901760
    %v1107 = vsub.f32 %v581, %v1106
    %1108 = vmatpush.msra.mxu0 %v1107
    %v1109 = vand.u32 %v579, 4294901760
    %v1110 = vsub.f32 %v579, %v1109
    %1111 = vmatpush.msra.mxu0 %v1110
    %v1112 = vand.u32 %v577, 4294901760
    %v1113 = vsub.f32 %v577, %v1112
    %1114 = vmatpush.msra.mxu0 %v1113
    %v1115 = vand.u32 %v575, 4294901760
    %v1116 = vsub.f32 %v575, %v1115
    %1117 = vmatpush.msra.mxu0 %v1116
    %v1118 = vand.u32 %v573, 4294901760
    %v1119 = vsub.f32 %v573, %v1118
    %1120 = vmatpush.msra.mxu0 %v1119
    %v1121 = vand.u32 %v571, 4294901760
    %v1122 = vsub.f32 %v571, %v1121
    %1123 = vmatpush.msra.mxu0 %v1122
    %v1124 = vand.u32 %v569, 4294901760
    %v1125 = vsub.f32 %v569, %v1124
    %1126 = vmatpush.msra.mxu0 %v1125
    %v1127 = vand.u32 %v567, 4294901760
    %v1128 = vsub.f32 %v567, %v1127
    %1129 = vmatpush.msra.mxu0 %v1128
    %v1130 = vand.u32 %v565, 4294901760
    %v1131 = vsub.f32 %v565, %v1130
    %1132 = vmatpush.msra.mxu0 %v1131
    %v1133 = vand.u32 %v532, 4294901760
    %v1134 = vsub.f32 %v532, %v1133
    %1135 = vmatmul.f32.gmra.mxu0 %v1134
    %v1136 = vpop.f32.mrf.mxu0
    %v1137 = vadd.f32 %v1083, %v1136
    %1138 = vdwg.mxu0
    %v1139 = vand.u32 %v595, 4294901760
    %1140 = vmatpush.msra.mxu0 %v1139
    %v1141 = vand.u32 %v593, 4294901760
    %1142 = vmatpush.msra.mxu0 %v1141
    %v1143 = vand.u32 %v591, 4294901760
    %1144 = vmatpush.msra.mxu0 %v1143
    %v1145 = vand.u32 %v589, 4294901760
    %1146 = vmatpush.msra.mxu0 %v1145
    %v1147 = vand.u32 %v587, 4294901760
    %1148 = vmatpush.msra.mxu0 %v1147
    %v1149 = vand.u32 %v585, 4294901760
    %1150 = vmatpush.msra.mxu0 %v1149
    %v1151 = vand.u32 %v583, 4294901760
    %1152 = vmatpush.msra.mxu0 %v1151
    %v1153 = vand.u32 %v581, 4294901760
    %1154 = vmatpush.msra.mxu0 %v1153
    %v1155 = vand.u32 %v579, 4294901760
    %1156 = vmatpush.msra.mxu0 %v1155
    %v1157 = vand.u32 %v577, 4294901760
    %1158 = vmatpush.msra.mxu0 %v1157
    %v1159 = vand.u32 %v575, 4294901760
    %1160 = vmatpush.msra.mxu0 %v1159
    %v1161 = vand.u32 %v573, 4294901760
    %1162 = vmatpush.msra.mxu0 %v1161
    %v1163 = vand.u32 %v571, 4294901760
    %1164 = vmatpush.msra.mxu0 %v1163
    %v1165 = vand.u32 %v569, 4294901760
    %1166 = vmatpush.msra.mxu0 %v1165
    %v1167 = vand.u32 %v567, 4294901760
    %1168 = vmatpush.msra.mxu0 %v1167
    %v1169 = vand.u32 %v565, 4294901760
    %1170 = vmatpush.msra.mxu0 %v1169
    %v1171 = vand.u32 %v532, 4294901760
    %v1172 = vsub.f32 %v532, %v1171
    %v1173 = vand.u32 %v1172, 4294901760
    %1174 = vmatmul.f32.gmra.mxu0 %v1173
    %v1175 = vpop.f32.mrf.mxu0
    %v1176 = vadd.f32 %v1137, %v1175
    %1177 = vdwg.mxu0
    %v1178 = vand.u32 %v595, 4294901760
    %v1179 = vsub.f32 %v595, %v1178
    %v1180 = vand.u32 %v1179, 4294901760
    %1181 = vmatpush.msra.mxu0 %v1180
    %v1182 = vand.u32 %v593, 4294901760
    %v1183 = vsub.f32 %v593, %v1182
    %v1184 = vand.u32 %v1183, 4294901760
    %1185 = vmatpush.msra.mxu0 %v1184
    %v1186 = vand.u32 %v591, 4294901760
    %v1187 = vsub.f32 %v591, %v1186
    %v1188 = vand.u32 %v1187, 4294901760
    %1189 = vmatpush.msra.mxu0 %v1188
    %v1190 = vand.u32 %v589, 4294901760
    %v1191 = vsub.f32 %v589, %v1190
    %v1192 = vand.u32 %v1191, 4294901760
    %1193 = vmatpush.msra.mxu0 %v1192
    %v1194 = vand.u32 %v587, 4294901760
    %v1195 = vsub.f32 %v587, %v1194
    %v1196 = vand.u32 %v1195, 4294901760
    %1197 = vmatpush.msra.mxu0 %v1196
    %v1198 = vand.u32 %v585, 4294901760
    %v1199 = vsub.f32 %v585, %v1198
    %v1200 = vand.u32 %v1199, 4294901760
    %1201 = vmatpush.msra.mxu0 %v1200
    %v1202 = vand.u32 %v583, 4294901760
    %v1203 = vsub.f32 %v583, %v1202
    %v1204 = vand.u32 %v1203, 4294901760
    %1205 = vmatpush.msra.mxu0 %v1204
    %v1206 = vand.u32 %v581, 4294901760
    %v1207 = vsub.f32 %v581, %v1206
    %v1208 = vand.u32 %v1207, 4294901760
    %1209 = vmatpush.msra.mxu0 %v1208
    %v1210 = vand.u32 %v579, 4294901760
    %v1211 = vsub.f32 %v579, %v1210
    %v1212 = vand.u32 %v1211, 4294901760
    %1213 = vmatpush.msra.mxu0 %v1212
    %v1214 = vand.u32 %v577, 4294901760
    %v1215 = vsub.f32 %v577, %v1214
    %v1216 = vand.u32 %v1215, 4294901760
    %1217 = vmatpush.msra.mxu0 %v1216
    %v1218 = vand.u32 %v575, 4294901760
    %v1219 = vsub.f32 %v575, %v1218
    %v1220 = vand.u32 %v1219, 4294901760
    %1221 = vmatpush.msra.mxu0 %v1220
    %v1222 = vand.u32 %v573, 4294901760
    %v1223 = vsub.f32 %v573, %v1222
    %v1224 = vand.u32 %v1223, 4294901760
    %1225 = vmatpush.msra.mxu0 %v1224
    %v1226 = vand.u32 %v571, 4294901760
    %v1227 = vsub.f32 %v571, %v1226
    %v1228 = vand.u32 %v1227, 4294901760
    %1229 = vmatpush.msra.mxu0 %v1228
    %v1230 = vand.u32 %v569, 4294901760
    %v1231 = vsub.f32 %v569, %v1230
    %v1232 = vand.u32 %v1231, 4294901760
    %1233 = vmatpush.msra.mxu0 %v1232
    %v1234 = vand.u32 %v567, 4294901760
    %v1235 = vsub.f32 %v567, %v1234
    %v1236 = vand.u32 %v1235, 4294901760
    %1237 = vmatpush.msra.mxu0 %v1236
    %v1238 = vand.u32 %v565, 4294901760
    %v1239 = vsub.f32 %v565, %v1238
    %v1240 = vand.u32 %v1239, 4294901760
    %1241 = vmatpush.msra.mxu0 %v1240
    %v1242 = vand.u32 %v532, 4294901760
    %1243 = vmatmul.f32.gmra.mxu0 %v1242
    %v1244 = vpop.f32.mrf.mxu0
    %v1245 = vadd.f32 %v1176, %v1244
    %1246 = vdwg.mxu0
    %v1247 = vand.u32 %v595, 4294901760
    %1248 = vmatpush.msra.mxu0 %v1247
    %v1249 = vand.u32 %v593, 4294901760
    %1250 = vmatpush.msra.mxu0 %v1249
    %v1251 = vand.u32 %v591, 4294901760
    %1252 = vmatpush.msra.mxu0 %v1251
    %v1253 = vand.u32 %v589, 4294901760
    %1254 = vmatpush.msra.mxu0 %v1253
    %v1255 = vand.u32 %v587, 4294901760
    %1256 = vmatpush.msra.mxu0 %v1255
    %v1257 = vand.u32 %v585, 4294901760
    %1258 = vmatpush.msra.mxu0 %v1257
    %v1259 = vand.u32 %v583, 4294901760
    %1260 = vmatpush.msra.mxu0 %v1259
    %v1261 = vand.u32 %v581, 4294901760
    %1262 = vmatpush.msra.mxu0 %v1261
    %v1263 = vand.u32 %v579, 4294901760
    %1264 = vmatpush.msra.mxu0 %v1263
    %v1265 = vand.u32 %v577, 4294901760
    %1266 = vmatpush.msra.mxu0 %v1265
    %v1267 = vand.u32 %v575, 4294901760
    %1268 = vmatpush.msra.mxu0 %v1267
    %v1269 = vand.u32 %v573, 4294901760
    %1270 = vmatpush.msra.mxu0 %v1269
    %v1271 = vand.u32 %v571, 4294901760
    %1272 = vmatpush.msra.mxu0 %v1271
    %v1273 = vand.u32 %v569, 4294901760
    %1274 = vmatpush.msra.mxu0 %v1273
    %v1275 = vand.u32 %v567, 4294901760
    %1276 = vmatpush.msra.mxu0 %v1275
    %v1277 = vand.u32 %v565, 4294901760
    %1278 = vmatpush.msra.mxu0 %v1277
    %v1279 = vand.u32 %v532, 4294901760
    %1280 = vmatmul.f32.gmra.mxu0 %v1279
    %v1281 = vpop.f32.mrf.mxu0
    %v1282 = vadd.f32 %v1245, %v1281
    %1283 = vdwg.mxu0
    %v1284 = vand.u32 %v564, 4294901760
    %1285 = vmatpush.msra.mxu0 %v1284
    %v1286 = vand.u32 %v562, 4294901760
    %1287 = vmatpush.msra.mxu0 %v1286
    %v1288 = vand.u32 %v560, 4294901760
    %1289 = vmatpush.msra.mxu0 %v1288
    %v1290 = vand.u32 %v558, 4294901760
    %1291 = vmatpush.msra.mxu0 %v1290
    %v1292 = vand.u32 %v556, 4294901760
    %1293 = vmatpush.msra.mxu0 %v1292
    %v1294 = vand.u32 %v554, 4294901760
    %1295 = vmatpush.msra.mxu0 %v1294
    %v1296 = vand.u32 %v552, 4294901760
    %1297 = vmatpush.msra.mxu0 %v1296
    %v1298 = vand.u32 %v550, 4294901760
    %1299 = vmatpush.msra.mxu0 %v1298
    %v1300 = vand.u32 %v548, 4294901760
    %1301 = vmatpush.msra.mxu0 %v1300
    %v1302 = vand.u32 %v546, 4294901760
    %1303 = vmatpush.msra.mxu0 %v1302
    %v1304 = vand.u32 %v544, 4294901760
    %1305 = vmatpush.msra.mxu0 %v1304
    %v1306 = vand.u32 %v542, 4294901760
    %1307 = vmatpush.msra.mxu0 %v1306
    %v1308 = vand.u32 %v540, 4294901760
    %1309 = vmatpush.msra.mxu0 %v1308
    %v1310 = vand.u32 %v538, 4294901760
    %1311 = vmatpush.msra.mxu0 %v1310
    %v1312 = vand.u32 %v536, 4294901760
    %1313 = vmatpush.msra.mxu0 %v1312
    %v1314 = vand.u32 %v534, 4294901760
    %1315 = vmatpush.msra.mxu0 %v1314
    %v1316 = vand.u32 %v531, 4294901760
    %v1317 = vsub.f32 %v531, %v1316
    %v1318 = vand.u32 %v1317, 4294901760
    %v1319 = vsub.f32 %v1317, %v1318
    %v1320 = vand.u32 %v1319, 4294901760
    %1321 = vmatmul.f32.gmra.mxu0 %v1320
    %v1322 = vpop.f32.mrf.mxu0
    %v1323 = vadd.f32 %v599, %v1322
    %1324 = vdwg.mxu0
    %v1325 = vand.u32 %v564, 4294901760
    %v1326 = vsub.f32 %v564, %v1325
    %v1327 = vand.u32 %v1326, 4294901760
    %v1328 = vsub.f32 %v1326, %v1327
    %v1329 = vand.u32 %v1328, 4294901760
    %1330 = vmatpush.msra.mxu0 %v1329
    %v1331 = vand.u32 %v562, 4294901760
    %v1332 = vsub.f32 %v562, %v1331
    %v1333 = vand.u32 %v1332, 4294901760
    %v1334 = vsub.f32 %v1332, %v1333
    %v1335 = vand.u32 %v1334, 4294901760
    %1336 = vmatpush.msra.mxu0 %v1335
    %v1337 = vand.u32 %v560, 4294901760
    %v1338 = vsub.f32 %v560, %v1337
    %v1339 = vand.u32 %v1338, 4294901760
    %v1340 = vsub.f32 %v1338, %v1339
    %v1341 = vand.u32 %v1340, 4294901760
    %1342 = vmatpush.msra.mxu0 %v1341
    %v1343 = vand.u32 %v558, 4294901760
    %v1344 = vsub.f32 %v558, %v1343
    %v1345 = vand.u32 %v1344, 4294901760
    %v1346 = vsub.f32 %v1344, %v1345
    %v1347 = vand.u32 %v1346, 4294901760
    %1348 = vmatpush.msra.mxu0 %v1347
    %v1349 = vand.u32 %v556, 4294901760
    %v1350 = vsub.f32 %v556, %v1349
    %v1351 = vand.u32 %v1350, 4294901760
    %v1352 = vsub.f32 %v1350, %v1351
    %v1353 = vand.u32 %v1352, 4294901760
    %1354 = vmatpush.msra.mxu0 %v1353
    %v1355 = vand.u32 %v554, 4294901760
    %v1356 = vsub.f32 %v554, %v1355
    %v1357 = vand.u32 %v1356, 4294901760
    %v1358 = vsub.f32 %v1356, %v1357
    %v1359 = vand.u32 %v1358, 4294901760
    %1360 = vmatpush.msra.mxu0 %v1359
    %v1361 = vand.u32 %v552, 4294901760
    %v1362 = vsub.f32 %v552, %v1361
    %v1363 = vand.u32 %v1362, 4294901760
    %v1364 = vsub.f32 %v1362, %v1363
    %v1365 = vand.u32 %v1364, 4294901760
    %1366 = vmatpush.msra.mxu0 %v1365
    %v1367 = vand.u32 %v550, 4294901760
    %v1368 = vsub.f32 %v550, %v1367
    %v1369 = vand.u32 %v1368, 4294901760
    %v1370 = vsub.f32 %v1368, %v1369
    %v1371 = vand.u32 %v1370, 4294901760
    %1372 = vmatpush.msra.mxu0 %v1371
    %v1373 = vand.u32 %v548, 4294901760
    %v1374 = vsub.f32 %v548, %v1373
    %v1375 = vand.u32 %v1374, 4294901760
    %v1376 = vsub.f32 %v1374, %v1375
    %v1377 = vand.u32 %v1376, 4294901760
    %1378 = vmatpush.msra.mxu0 %v1377
    %v1379 = vand.u32 %v546, 4294901760
    %v1380 = vsub.f32 %v546, %v1379
    %v1381 = vand.u32 %v1380, 4294901760
    %v1382 = vsub.f32 %v1380, %v1381
    %v1383 = vand.u32 %v1382, 4294901760
    %1384 = vmatpush.msra.mxu0 %v1383
    %v1385 = vand.u32 %v544, 4294901760
    %v1386 = vsub.f32 %v544, %v1385
    %v1387 = vand.u32 %v1386, 4294901760
    %v1388 = vsub.f32 %v1386, %v1387
    %v1389 = vand.u32 %v1388, 4294901760
    %1390 = vmatpush.msra.mxu0 %v1389
    %v1391 = vand.u32 %v542, 4294901760
    %v1392 = vsub.f32 %v542, %v1391
    %v1393 = vand.u32 %v1392, 4294901760
    %v1394 = vsub.f32 %v1392, %v1393
    %v1395 = vand.u32 %v1394, 4294901760
    %1396 = vmatpush.msra.mxu0 %v1395
    %v1397 = vand.u32 %v540, 4294901760
    %v1398 = vsub.f32 %v540, %v1397
    %v1399 = vand.u32 %v1398, 4294901760
    %v1400 = vsub.f32 %v1398, %v1399
    %v1401 = vand.u32 %v1400, 4294901760
    %1402 = vmatpush.msra.mxu0 %v1401
    %v1403 = vand.u32 %v538, 4294901760
    %v1404 = vsub.f32 %v538, %v1403
    %v1405 = vand.u32 %v1404, 4294901760
    %v1406 = vsub.f32 %v1404, %v1405
    %v1407 = vand.u32 %v1406, 4294901760
    %1408 = vmatpush.msra.mxu0 %v1407
    %v1409 = vand.u32 %v536, 4294901760
    %v1410 = vsub.f32 %v536, %v1409
    %v1411 = vand.u32 %v1410, 4294901760
    %v1412 = vsub.f32 %v1410, %v1411
    %v1413 = vand.u32 %v1412, 4294901760
    %1414 = vmatpush.msra.mxu0 %v1413
    %v1415 = vand.u32 %v534, 4294901760
    %v1416 = vsub.f32 %v534, %v1415
    %v1417 = vand.u32 %v1416, 4294901760
    %v1418 = vsub.f32 %v1416, %v1417
    %v1419 = vand.u32 %v1418, 4294901760
    %1420 = vmatpush.msra.mxu0 %v1419
    %v1421 = vand.u32 %v531, 4294901760
    %1422 = vmatmul.f32.gmra.mxu0 %v1421
    %v1423 = vpop.f32.mrf.mxu0
    %v1424 = vadd.f32 %v1323, %v1423
    %1425 = vdwg.mxu0
    %v1426 = vand.u32 %v564, 4294901760
    %v1427 = vsub.f32 %v564, %v1426
    %1428 = vmatpush.msra.mxu0 %v1427
    %v1429 = vand.u32 %v562, 4294901760
    %v1430 = vsub.f32 %v562, %v1429
    %1431 = vmatpush.msra.mxu0 %v1430
    %v1432 = vand.u32 %v560, 4294901760
    %v1433 = vsub.f32 %v560, %v1432
    %1434 = vmatpush.msra.mxu0 %v1433
    %v1435 = vand.u32 %v558, 4294901760
    %v1436 = vsub.f32 %v558, %v1435
    %1437 = vmatpush.msra.mxu0 %v1436
    %v1438 = vand.u32 %v556, 4294901760
    %v1439 = vsub.f32 %v556, %v1438
    %1440 = vmatpush.msra.mxu0 %v1439
    %v1441 = vand.u32 %v554, 4294901760
    %v1442 = vsub.f32 %v554, %v1441
    %1443 = vmatpush.msra.mxu0 %v1442
    %v1444 = vand.u32 %v552, 4294901760
    %v1445 = vsub.f32 %v552, %v1444
    %1446 = vmatpush.msra.mxu0 %v1445
    %v1447 = vand.u32 %v550, 4294901760
    %v1448 = vsub.f32 %v550, %v1447
    %1449 = vmatpush.msra.mxu0 %v1448
    %v1450 = vand.u32 %v548, 4294901760
    %v1451 = vsub.f32 %v548, %v1450
    %1452 = vmatpush.msra.mxu0 %v1451
    %v1453 = vand.u32 %v546, 4294901760
    %v1454 = vsub.f32 %v546, %v1453
    %1455 = vmatpush.msra.mxu0 %v1454
    %v1456 = vand.u32 %v544, 4294901760
    %v1457 = vsub.f32 %v544, %v1456
    %1458 = vmatpush.msra.mxu0 %v1457
    %v1459 = vand.u32 %v542, 4294901760
    %v1460 = vsub.f32 %v542, %v1459
    %1461 = vmatpush.msra.mxu0 %v1460
    %v1462 = vand.u32 %v540, 4294901760
    %v1463 = vsub.f32 %v540, %v1462
    %1464 = vmatpush.msra.mxu0 %v1463
    %v1465 = vand.u32 %v538, 4294901760
    %v1466 = vsub.f32 %v538, %v1465
    %1467 = vmatpush.msra.mxu0 %v1466
    %v1468 = vand.u32 %v536, 4294901760
    %v1469 = vsub.f32 %v536, %v1468
    %1470 = vmatpush.msra.mxu0 %v1469
    %v1471 = vand.u32 %v534, 4294901760
    %v1472 = vsub.f32 %v534, %v1471
    %1473 = vmatpush.msra.mxu0 %v1472
    %v1474 = vand.u32 %v531, 4294901760
    %v1475 = vsub.f32 %v531, %v1474
    %1476 = vmatmul.f32.gmra.mxu0 %v1475
    %v1477 = vpop.f32.mrf.mxu0
    %v1478 = vadd.f32 %v1424, %v1477
    %1479 = vdwg.mxu0
    %v1480 = vand.u32 %v564, 4294901760
    %1481 = vmatpush.msra.mxu0 %v1480
    %v1482 = vand.u32 %v562, 4294901760
    %1483 = vmatpush.msra.mxu0 %v1482
    %v1484 = vand.u32 %v560, 4294901760
    %1485 = vmatpush.msra.mxu0 %v1484
    %v1486 = vand.u32 %v558, 4294901760
    %1487 = vmatpush.msra.mxu0 %v1486
    %v1488 = vand.u32 %v556, 4294901760
    %1489 = vmatpush.msra.mxu0 %v1488
    %v1490 = vand.u32 %v554, 4294901760
    %1491 = vmatpush.msra.mxu0 %v1490
    %v1492 = vand.u32 %v552, 4294901760
    %1493 = vmatpush.msra.mxu0 %v1492
    %v1494 = vand.u32 %v550, 4294901760
    %1495 = vmatpush.msra.mxu0 %v1494
    %v1496 = vand.u32 %v548, 4294901760
    %1497 = vmatpush.msra.mxu0 %v1496
    %v1498 = vand.u32 %v546, 4294901760
    %1499 = vmatpush.msra.mxu0 %v1498
    %v1500 = vand.u32 %v544, 4294901760
    %1501 = vmatpush.msra.mxu0 %v1500
    %v1502 = vand.u32 %v542, 4294901760
    %1503 = vmatpush.msra.mxu0 %v1502
    %v1504 = vand.u32 %v540, 4294901760
    %1505 = vmatpush.msra.mxu0 %v1504
    %v1506 = vand.u32 %v538, 4294901760
    %1507 = vmatpush.msra.mxu0 %v1506
    %v1508 = vand.u32 %v536, 4294901760
    %1509 = vmatpush.msra.mxu0 %v1508
    %v1510 = vand.u32 %v534, 4294901760
    %1511 = vmatpush.msra.mxu0 %v1510
    %v1512 = vand.u32 %v531, 4294901760
    %v1513 = vsub.f32 %v531, %v1512
    %v1514 = vand.u32 %v1513, 4294901760
    %1515 = vmatmul.f32.gmra.mxu0 %v1514
    %v1516 = vpop.f32.mrf.mxu0
    %v1517 = vadd.f32 %v1478, %v1516
    %1518 = vdwg.mxu0
    %v1519 = vand.u32 %v564, 4294901760
    %v1520 = vsub.f32 %v564, %v1519
    %v1521 = vand.u32 %v1520, 4294901760
    %1522 = vmatpush.msra.mxu0 %v1521
    %v1523 = vand.u32 %v562, 4294901760
    %v1524 = vsub.f32 %v562, %v1523
    %v1525 = vand.u32 %v1524, 4294901760
    %1526 = vmatpush.msra.mxu0 %v1525
    %v1527 = vand.u32 %v560, 4294901760
    %v1528 = vsub.f32 %v560, %v1527
    %v1529 = vand.u32 %v1528, 4294901760
    %1530 = vmatpush.msra.mxu0 %v1529
    %v1531 = vand.u32 %v558, 4294901760
    %v1532 = vsub.f32 %v558, %v1531
    %v1533 = vand.u32 %v1532, 4294901760
    %1534 = vmatpush.msra.mxu0 %v1533
    %v1535 = vand.u32 %v556, 4294901760
    %v1536 = vsub.f32 %v556, %v1535
    %v1537 = vand.u32 %v1536, 4294901760
    %1538 = vmatpush.msra.mxu0 %v1537
    %v1539 = vand.u32 %v554, 4294901760
    %v1540 = vsub.f32 %v554, %v1539
    %v1541 = vand.u32 %v1540, 4294901760
    %1542 = vmatpush.msra.mxu0 %v1541
    %v1543 = vand.u32 %v552, 4294901760
    %v1544 = vsub.f32 %v552, %v1543
    %v1545 = vand.u32 %v1544, 4294901760
    %1546 = vmatpush.msra.mxu0 %v1545
    %v1547 = vand.u32 %v550, 4294901760
    %v1548 = vsub.f32 %v550, %v1547
    %v1549 = vand.u32 %v1548, 4294901760
    %1550 = vmatpush.msra.mxu0 %v1549
    %v1551 = vand.u32 %v548, 4294901760
    %v1552 = vsub.f32 %v548, %v1551
    %v1553 = vand.u32 %v1552, 4294901760
    %1554 = vmatpush.msra.mxu0 %v1553
    %v1555 = vand.u32 %v546, 4294901760
    %v1556 = vsub.f32 %v546, %v1555
    %v1557 = vand.u32 %v1556, 4294901760
    %1558 = vmatpush.msra.mxu0 %v1557
    %v1559 = vand.u32 %v544, 4294901760
    %v1560 = vsub.f32 %v544, %v1559
    %v1561 = vand.u32 %v1560, 4294901760
    %1562 = vmatpush.msra.mxu0 %v1561
    %v1563 = vand.u32 %v542, 4294901760
    %v1564 = vsub.f32 %v542, %v1563
    %v1565 = vand.u32 %v1564, 4294901760
    %1566 = vmatpush.msra.mxu0 %v1565
    %v1567 = vand.u32 %v540, 4294901760
    %v1568 = vsub.f32 %v540, %v1567
    %v1569 = vand.u32 %v1568, 4294901760
    %1570 = vmatpush.msra.mxu0 %v1569
    %v1571 = vand.u32 %v538, 4294901760
    %v1572 = vsub.f32 %v538, %v1571
    %v1573 = vand.u32 %v1572, 4294901760
    %1574 = vmatpush.msra.mxu0 %v1573
    %v1575 = vand.u32 %v536, 4294901760
    %v1576 = vsub.f32 %v536, %v1575
    %v1577 = vand.u32 %v1576, 4294901760
    %1578 = vmatpush.msra.mxu0 %v1577
    %v1579 = vand.u32 %v534, 4294901760
    %v1580 = vsub.f32 %v534, %v1579
    %v1581 = vand.u32 %v1580, 4294901760
    %1582 = vmatpush.msra.mxu0 %v1581
    %v1583 = vand.u32 %v531, 4294901760
    %1584 = vmatmul.f32.gmra.mxu0 %v1583
    %v1585 = vpop.f32.mrf.mxu0
    %v1586 = vadd.f32 %v1517, %v1585
    %1587 = vdwg.mxu0
    %v1588 = vand.u32 %v564, 4294901760
    %1589 = vmatpush.msra.mxu0 %v1588
    %v1590 = vand.u32 %v562, 4294901760
    %1591 = vmatpush.msra.mxu0 %v1590
    %v1592 = vand.u32 %v560, 4294901760
    %1593 = vmatpush.msra.mxu0 %v1592
    %v1594 = vand.u32 %v558, 4294901760
    %1595 = vmatpush.msra.mxu0 %v1594
    %v1596 = vand.u32 %v556, 4294901760
    %1597 = vmatpush.msra.mxu0 %v1596
    %v1598 = vand.u32 %v554, 4294901760
    %1599 = vmatpush.msra.mxu0 %v1598
    %v1600 = vand.u32 %v552, 4294901760
    %1601 = vmatpush.msra.mxu0 %v1600
    %v1602 = vand.u32 %v550, 4294901760
    %1603 = vmatpush.msra.mxu0 %v1602
    %v1604 = vand.u32 %v548, 4294901760
    %1605 = vmatpush.msra.mxu0 %v1604
    %v1606 = vand.u32 %v546, 4294901760
    %1607 = vmatpush.msra.mxu0 %v1606
    %v1608 = vand.u32 %v544, 4294901760
    %1609 = vmatpush.msra.mxu0 %v1608
    %v1610 = vand.u32 %v542, 4294901760
    %1611 = vmatpush.msra.mxu0 %v1610
    %v1612 = vand.u32 %v540, 4294901760
    %1613 = vmatpush.msra.mxu0 %v1612
    %v1614 = vand.u32 %v538, 4294901760
    %1615 = vmatpush.msra.mxu0 %v1614
    %v1616 = vand.u32 %v536, 4294901760
    %1617 = vmatpush.msra.mxu0 %v1616
    %v1618 = vand.u32 %v534, 4294901760
    %1619 = vmatpush.msra.mxu0 %v1618
    %v1620 = vand.u32 %v531, 4294901760
    %1621 = vmatmul.f32.gmra.mxu0 %v1620
    %v1622 = vpop.f32.mrf.mxu0
    %v1623 = vadd.f32 %v1586, %v1622
    %1624 = vdwg.mxu0
    %v1625 = vand.u32 %v596, 4294901760
    %1626 = vmatpush.msra.mxu0 %v1625
    %v1627 = vand.u32 %v594, 4294901760
    %1628 = vmatpush.msra.mxu0 %v1627
    %v1629 = vand.u32 %v592, 4294901760
    %1630 = vmatpush.msra.mxu0 %v1629
    %v1631 = vand.u32 %v590, 4294901760
    %1632 = vmatpush.msra.mxu0 %v1631
    %v1633 = vand.u32 %v588, 4294901760
    %1634 = vmatpush.msra.mxu0 %v1633
    %v1635 = vand.u32 %v586, 4294901760
    %1636 = vmatpush.msra.mxu0 %v1635
    %v1637 = vand.u32 %v584, 4294901760
    %1638 = vmatpush.msra.mxu0 %v1637
    %v1639 = vand.u32 %v582, 4294901760
    %1640 = vmatpush.msra.mxu0 %v1639
    %v1641 = vand.u32 %v580, 4294901760
    %1642 = vmatpush.msra.mxu0 %v1641
    %v1643 = vand.u32 %v578, 4294901760
    %1644 = vmatpush.msra.mxu0 %v1643
    %v1645 = vand.u32 %v576, 4294901760
    %1646 = vmatpush.msra.mxu0 %v1645
    %v1647 = vand.u32 %v574, 4294901760
    %1648 = vmatpush.msra.mxu0 %v1647
    %v1649 = vand.u32 %v572, 4294901760
    %1650 = vmatpush.msra.mxu0 %v1649
    %v1651 = vand.u32 %v570, 4294901760
    %1652 = vmatpush.msra.mxu0 %v1651
    %v1653 = vand.u32 %v568, 4294901760
    %1654 = vmatpush.msra.mxu0 %v1653
    %v1655 = vand.u32 %v566, 4294901760
    %1656 = vmatpush.msra.mxu0 %v1655
    %v1657 = vand.u32 %v532, 4294901760
    %v1658 = vsub.f32 %v532, %v1657
    %v1659 = vand.u32 %v1658, 4294901760
    %v1660 = vsub.f32 %v1658, %v1659
    %v1661 = vand.u32 %v1660, 4294901760
    %1662 = vmatmul.f32.gmra.mxu0 %v1661
    %v1663 = vpop.f32.mrf.mxu0
    %v1664 = vadd.f32 %v1623, %v1663
    %1665 = vdwg.mxu0
    %v1666 = vand.u32 %v596, 4294901760
    %v1667 = vsub.f32 %v596, %v1666
    %v1668 = vand.u32 %v1667, 4294901760
    %v1669 = vsub.f32 %v1667, %v1668
    %v1670 = vand.u32 %v1669, 4294901760
    %1671 = vmatpush.msra.mxu0 %v1670
    %v1672 = vand.u32 %v594, 4294901760
    %v1673 = vsub.f32 %v594, %v1672
    %v1674 = vand.u32 %v1673, 4294901760
    %v1675 = vsub.f32 %v1673, %v1674
    %v1676 = vand.u32 %v1675, 4294901760
    %1677 = vmatpush.msra.mxu0 %v1676
    %v1678 = vand.u32 %v592, 4294901760
    %v1679 = vsub.f32 %v592, %v1678
    %v1680 = vand.u32 %v1679, 4294901760
    %v1681 = vsub.f32 %v1679, %v1680
    %v1682 = vand.u32 %v1681, 4294901760
    %1683 = vmatpush.msra.mxu0 %v1682
    %v1684 = vand.u32 %v590, 4294901760
    %v1685 = vsub.f32 %v590, %v1684
    %v1686 = vand.u32 %v1685, 4294901760
    %v1687 = vsub.f32 %v1685, %v1686
    %v1688 = vand.u32 %v1687, 4294901760
    %1689 = vmatpush.msra.mxu0 %v1688
    %v1690 = vand.u32 %v588, 4294901760
    %v1691 = vsub.f32 %v588, %v1690
    %v1692 = vand.u32 %v1691, 4294901760
    %v1693 = vsub.f32 %v1691, %v1692
    %v1694 = vand.u32 %v1693, 4294901760
    %1695 = vmatpush.msra.mxu0 %v1694
    %v1696 = vand.u32 %v586, 4294901760
    %v1697 = vsub.f32 %v586, %v1696
    %v1698 = vand.u32 %v1697, 4294901760
    %v1699 = vsub.f32 %v1697, %v1698
    %v1700 = vand.u32 %v1699, 4294901760
    %1701 = vmatpush.msra.mxu0 %v1700
    %v1702 = vand.u32 %v584, 4294901760
    %v1703 = vsub.f32 %v584, %v1702
    %v1704 = vand.u32 %v1703, 4294901760
    %v1705 = vsub.f32 %v1703, %v1704
    %v1706 = vand.u32 %v1705, 4294901760
    %1707 = vmatpush.msra.mxu0 %v1706
    %v1708 = vand.u32 %v582, 4294901760
    %v1709 = vsub.f32 %v582, %v1708
    %v1710 = vand.u32 %v1709, 4294901760
    %v1711 = vsub.f32 %v1709, %v1710
    %v1712 = vand.u32 %v1711, 4294901760
    %1713 = vmatpush.msra.mxu0 %v1712
    %v1714 = vand.u32 %v580, 4294901760
    %v1715 = vsub.f32 %v580, %v1714
    %v1716 = vand.u32 %v1715, 4294901760
    %v1717 = vsub.f32 %v1715, %v1716
    %v1718 = vand.u32 %v1717, 4294901760
    %1719 = vmatpush.msra.mxu0 %v1718
    %v1720 = vand.u32 %v578, 4294901760
    %v1721 = vsub.f32 %v578, %v1720
    %v1722 = vand.u32 %v1721, 4294901760
    %v1723 = vsub.f32 %v1721, %v1722
    %v1724 = vand.u32 %v1723, 4294901760
    %1725 = vmatpush.msra.mxu0 %v1724
    %v1726 = vand.u32 %v576, 4294901760
    %v1727 = vsub.f32 %v576, %v1726
    %v1728 = vand.u32 %v1727, 4294901760
    %v1729 = vsub.f32 %v1727, %v1728
    %v1730 = vand.u32 %v1729, 4294901760
    %1731 = vmatpush.msra.mxu0 %v1730
    %v1732 = vand.u32 %v574, 4294901760
    %v1733 = vsub.f32 %v574, %v1732
    %v1734 = vand.u32 %v1733, 4294901760
    %v1735 = vsub.f32 %v1733, %v1734
    %v1736 = vand.u32 %v1735, 4294901760
    %1737 = vmatpush.msra.mxu0 %v1736
    %v1738 = vand.u32 %v572, 4294901760
    %v1739 = vsub.f32 %v572, %v1738
    %v1740 = vand.u32 %v1739, 4294901760
    %v1741 = vsub.f32 %v1739, %v1740
    %v1742 = vand.u32 %v1741, 4294901760
    %1743 = vmatpush.msra.mxu0 %v1742
    %v1744 = vand.u32 %v570, 4294901760
    %v1745 = vsub.f32 %v570, %v1744
    %v1746 = vand.u32 %v1745, 4294901760
    %v1747 = vsub.f32 %v1745, %v1746
    %v1748 = vand.u32 %v1747, 4294901760
    %1749 = vmatpush.msra.mxu0 %v1748
    %v1750 = vand.u32 %v568, 4294901760
    %v1751 = vsub.f32 %v568, %v1750
    %v1752 = vand.u32 %v1751, 4294901760
    %v1753 = vsub.f32 %v1751, %v1752
    %v1754 = vand.u32 %v1753, 4294901760
    %1755 = vmatpush.msra.mxu0 %v1754
    %v1756 = vand.u32 %v566, 4294901760
    %v1757 = vsub.f32 %v566, %v1756
    %v1758 = vand.u32 %v1757, 4294901760
    %v1759 = vsub.f32 %v1757, %v1758
    %v1760 = vand.u32 %v1759, 4294901760
    %1761 = vmatpush.msra.mxu0 %v1760
    %v1762 = vand.u32 %v532, 4294901760
    %1763 = vmatmul.f32.gmra.mxu0 %v1762
    %v1764 = vpop.f32.mrf.mxu0
    %v1765 = vadd.f32 %v1664, %v1764
    %1766 = vdwg.mxu0
    %v1767 = vand.u32 %v596, 4294901760
    %v1768 = vsub.f32 %v596, %v1767
    %1769 = vmatpush.msra.mxu0 %v1768
    %v1770 = vand.u32 %v594, 4294901760
    %v1771 = vsub.f32 %v594, %v1770
    %1772 = vmatpush.msra.mxu0 %v1771
    %v1773 = vand.u32 %v592, 4294901760
    %v1774 = vsub.f32 %v592, %v1773
    %1775 = vmatpush.msra.mxu0 %v1774
    %v1776 = vand.u32 %v590, 4294901760
    %v1777 = vsub.f32 %v590, %v1776
    %1778 = vmatpush.msra.mxu0 %v1777
    %v1779 = vand.u32 %v588, 4294901760
    %v1780 = vsub.f32 %v588, %v1779
    %1781 = vmatpush.msra.mxu0 %v1780
    %v1782 = vand.u32 %v586, 4294901760
    %v1783 = vsub.f32 %v586, %v1782
    %1784 = vmatpush.msra.mxu0 %v1783
    %v1785 = vand.u32 %v584, 4294901760
    %v1786 = vsub.f32 %v584, %v1785
    %1787 = vmatpush.msra.mxu0 %v1786
    %v1788 = vand.u32 %v582, 4294901760
    %v1789 = vsub.f32 %v582, %v1788
    %1790 = vmatpush.msra.mxu0 %v1789
    %v1791 = vand.u32 %v580, 4294901760
    %v1792 = vsub.f32 %v580, %v1791
    %1793 = vmatpush.msra.mxu0 %v1792
    %v1794 = vand.u32 %v578, 4294901760
    %v1795 = vsub.f32 %v578, %v1794
    %1796 = vmatpush.msra.mxu0 %v1795
    %v1797 = vand.u32 %v576, 4294901760
    %v1798 = vsub.f32 %v576, %v1797
    %1799 = vmatpush.msra.mxu0 %v1798
    %v1800 = vand.u32 %v574, 4294901760
    %v1801 = vsub.f32 %v574, %v1800
    %1802 = vmatpush.msra.mxu0 %v1801
    %v1803 = vand.u32 %v572, 4294901760
    %v1804 = vsub.f32 %v572, %v1803
    %1805 = vmatpush.msra.mxu0 %v1804
    %v1806 = vand.u32 %v570, 4294901760
    %v1807 = vsub.f32 %v570, %v1806
    %1808 = vmatpush.msra.mxu0 %v1807
    %v1809 = vand.u32 %v568, 4294901760
    %v1810 = vsub.f32 %v568, %v1809
    %1811 = vmatpush.msra.mxu0 %v1810
    %v1812 = vand.u32 %v566, 4294901760
    %v1813 = vsub.f32 %v566, %v1812
    %1814 = vmatpush.msra.mxu0 %v1813
    %v1815 = vand.u32 %v532, 4294901760
    %v1816 = vsub.f32 %v532, %v1815
    %1817 = vmatmul.f32.gmra.mxu0 %v1816
    %v1818 = vpop.f32.mrf.mxu0
    %v1819 = vadd.f32 %v1765, %v1818
    %1820 = vdwg.mxu0
    %v1821 = vand.u32 %v596, 4294901760
    %1822 = vmatpush.msra.mxu0 %v1821
    %v1823 = vand.u32 %v594, 4294901760
    %1824 = vmatpush.msra.mxu0 %v1823
    %v1825 = vand.u32 %v592, 4294901760
    %1826 = vmatpush.msra.mxu0 %v1825
    %v1827 = vand.u32 %v590, 4294901760
    %1828 = vmatpush.msra.mxu0 %v1827
    %v1829 = vand.u32 %v588, 4294901760
    %1830 = vmatpush.msra.mxu0 %v1829
    %v1831 = vand.u32 %v586, 4294901760
    %1832 = vmatpush.msra.mxu0 %v1831
    %v1833 = vand.u32 %v584, 4294901760
    %1834 = vmatpush.msra.mxu0 %v1833
    %v1835 = vand.u32 %v582, 4294901760
    %1836 = vmatpush.msra.mxu0 %v1835
    %v1837 = vand.u32 %v580, 4294901760
    %1838 = vmatpush.msra.mxu0 %v1837
    %v1839 = vand.u32 %v578, 4294901760
    %1840 = vmatpush.msra.mxu0 %v1839
    %v1841 = vand.u32 %v576, 4294901760
    %1842 = vmatpush.msra.mxu0 %v1841
    %v1843 = vand.u32 %v574, 4294901760
    %1844 = vmatpush.msra.mxu0 %v1843
    %v1845 = vand.u32 %v572, 4294901760
    %1846 = vmatpush.msra.mxu0 %v1845
    %v1847 = vand.u32 %v570, 4294901760
    %1848 = vmatpush.msra.mxu0 %v1847
    %v1849 = vand.u32 %v568, 4294901760
    %1850 = vmatpush.msra.mxu0 %v1849
    %v1851 = vand.u32 %v566, 4294901760
    %1852 = vmatpush.msra.mxu0 %v1851
    %v1853 = vand.u32 %v532, 4294901760
    %v1854 = vsub.f32 %v532, %v1853
    %v1855 = vand.u32 %v1854, 4294901760
    %1856 = vmatmul.f32.gmra.mxu0 %v1855
    %v1857 = vpop.f32.mrf.mxu0
    %v1858 = vadd.f32 %v1819, %v1857
    %1859 = vdwg.mxu0
    %v1860 = vand.u32 %v596, 4294901760
    %v1861 = vsub.f32 %v596, %v1860
    %v1862 = vand.u32 %v1861, 4294901760
    %1863 = vmatpush.msra.mxu0 %v1862
    %v1864 = vand.u32 %v594, 4294901760
    %v1865 = vsub.f32 %v594, %v1864
    %v1866 = vand.u32 %v1865, 4294901760
    %1867 = vmatpush.msra.mxu0 %v1866
    %v1868 = vand.u32 %v592, 4294901760
    %v1869 = vsub.f32 %v592, %v1868
    %v1870 = vand.u32 %v1869, 4294901760
    %1871 = vmatpush.msra.mxu0 %v1870
    %v1872 = vand.u32 %v590, 4294901760
    %v1873 = vsub.f32 %v590, %v1872
    %v1874 = vand.u32 %v1873, 4294901760
    %1875 = vmatpush.msra.mxu0 %v1874
    %v1876 = vand.u32 %v588, 4294901760
    %v1877 = vsub.f32 %v588, %v1876
    %v1878 = vand.u32 %v1877, 4294901760
    %1879 = vmatpush.msra.mxu0 %v1878
    %v1880 = vand.u32 %v586, 4294901760
    %v1881 = vsub.f32 %v586, %v1880
    %v1882 = vand.u32 %v1881, 4294901760
    %1883 = vmatpush.msra.mxu0 %v1882
    %v1884 = vand.u32 %v584, 4294901760
    %v1885 = vsub.f32 %v584, %v1884
    %v1886 = vand.u32 %v1885, 4294901760
    %1887 = vmatpush.msra.mxu0 %v1886
    %v1888 = vand.u32 %v582, 4294901760
    %v1889 = vsub.f32 %v582, %v1888
    %v1890 = vand.u32 %v1889, 4294901760
    %1891 = vmatpush.msra.mxu0 %v1890
    %v1892 = vand.u32 %v580, 4294901760
    %v1893 = vsub.f32 %v580, %v1892
    %v1894 = vand.u32 %v1893, 4294901760
    %1895 = vmatpush.msra.mxu0 %v1894
    %v1896 = vand.u32 %v578, 4294901760
    %v1897 = vsub.f32 %v578, %v1896
    %v1898 = vand.u32 %v1897, 4294901760
    %1899 = vmatpush.msra.mxu0 %v1898
    %v1900 = vand.u32 %v576, 4294901760
    %v1901 = vsub.f32 %v576, %v1900
    %v1902 = vand.u32 %v1901, 4294901760
    %1903 = vmatpush.msra.mxu0 %v1902
    %v1904 = vand.u32 %v574, 4294901760
    %v1905 = vsub.f32 %v574, %v1904
    %v1906 = vand.u32 %v1905, 4294901760
    %1907 = vmatpush.msra.mxu0 %v1906
    %v1908 = vand.u32 %v572, 4294901760
    %v1909 = vsub.f32 %v572, %v1908
    %v1910 = vand.u32 %v1909, 4294901760
    %1911 = vmatpush.msra.mxu0 %v1910
    %v1912 = vand.u32 %v570, 4294901760
    %v1913 = vsub.f32 %v570, %v1912
    %v1914 = vand.u32 %v1913, 4294901760
    %1915 = vmatpush.msra.mxu0 %v1914
    %v1916 = vand.u32 %v568, 4294901760
    %v1917 = vsub.f32 %v568, %v1916
    %v1918 = vand.u32 %v1917, 4294901760
    %1919 = vmatpush.msra.mxu0 %v1918
    %v1920 = vand.u32 %v566, 4294901760
    %v1921 = vsub.f32 %v566, %v1920
    %v1922 = vand.u32 %v1921, 4294901760
    %1923 = vmatpush.msra.mxu0 %v1922
    %v1924 = vand.u32 %v532, 4294901760
    %1925 = vmatmul.f32.gmra.mxu0 %v1924
    %v1926 = vpop.f32.mrf.mxu0
    %v1927 = vadd.f32 %v1858, %v1926
    %1928 = vdwg.mxu0
    %v1929 = vand.u32 %v596, 4294901760
    %1930 = vmatpush.msra.mxu0 %v1929
    %v1931 = vand.u32 %v594, 4294901760
    %1932 = vmatpush.msra.mxu0 %v1931
    %v1933 = vand.u32 %v592, 4294901760
    %1934 = vmatpush.msra.mxu0 %v1933
    %v1935 = vand.u32 %v590, 4294901760
    %1936 = vmatpush.msra.mxu0 %v1935
    %v1937 = vand.u32 %v588, 4294901760
    %1938 = vmatpush.msra.mxu0 %v1937
    %v1939 = vand.u32 %v586, 4294901760
    %1940 = vmatpush.msra.mxu0 %v1939
    %v1941 = vand.u32 %v584, 4294901760
    %1942 = vmatpush.msra.mxu0 %v1941
    %v1943 = vand.u32 %v582, 4294901760
    %1944 = vmatpush.msra.mxu0 %v1943
    %v1945 = vand.u32 %v580, 4294901760
    %1946 = vmatpush.msra.mxu0 %v1945
    %v1947 = vand.u32 %v578, 4294901760
    %1948 = vmatpush.msra.mxu0 %v1947
    %v1949 = vand.u32 %v576, 4294901760
    %1950 = vmatpush.msra.mxu0 %v1949
    %v1951 = vand.u32 %v574, 4294901760
    %1952 = vmatpush.msra.mxu0 %v1951
    %v1953 = vand.u32 %v572, 4294901760
    %1954 = vmatpush.msra.mxu0 %v1953
    %v1955 = vand.u32 %v570, 4294901760
    %1956 = vmatpush.msra.mxu0 %v1955
    %v1957 = vand.u32 %v568, 4294901760
    %1958 = vmatpush.msra.mxu0 %v1957
    %v1959 = vand.u32 %v566, 4294901760
    %1960 = vmatpush.msra.mxu0 %v1959
    %v1961 = vand.u32 %v532, 4294901760
    %1962 = vmatmul.f32.gmra.mxu0 %v1961
    %v1963 = vpop.f32.mrf.mxu0
    %v1964 = vadd.f32 %v1927, %v1963
    %1965 = vdwg.mxu0
    %v1966 = vadd.f32 %v1282, %v258
    %v1967 = vadd.f32 %v1964, %v443
    %v1968 = vadd.f32 %v1966, %v1967
    %1969 = vadd.xlane.f32.xlu0 %v1968
    %v1970 = vpop.xlane.xlu0 %1969
    %v1971 = vmul.f32 %v1966, %v1966
    %v1972 = vmul.f32 %v1967, %v1967
    %v1973 = vadd.f32 %v1971, %v1972
    %1974 = vadd.xlane.f32.xlu0 %v1973
    %v1975 = vpop.xlane.xlu0 %1974
    %v1976 = vmul.f32 %v1970, 0.00390625
    %v1977 = vmul.f32 %v1975, 0.00390625
    %v1978 = vmul.f32 %v1976, %v1976
    %v1979 = vsub.f32 %v1977, %v1978
    %v1980 = vmax.f32 %v1979, 0.0
    %v1981 = vsub.f32 %v1966, %v1976
    %v1982 = vsub.f32 %v1967, %v1976
    %v1983 = vadd.f32 %v1980, 1e-05
    %v1984 = vrsqrt.pop %v1983
    %v1985 = vmul.f32 %v1984, %v1983
    %v1986 = vmul.f32 %v1985, %v1984
    %v1987 = vmul.f32 0.5, %v1986
    %v1988 = vsub.f32 1.5, %v1987
    %v1989 = vmul.f32 %v1984, %v1988
    %vm1990 = vweird.f32 %v1983
    %vm1991 = vweird.f32 %v1984
    %vm1992 = vmor %vm1990, %vm1991
    %v1993 = vsel %vm1992, %v1984, %v1989
    %v1994 = vmul.f32 %v1981, %v1993
    %v1995 = vmul.f32 %v1982, %v1993
    %v1997 = vperm.slane %v55, 0
    %v1998 = vperm.slane %v55, 1
    %v2001 = vmul.f32 %v1994, %v1997
    %v2002 = vmul.f32 %v1995, %v1998
    %v2004 = vperm.slane %v57, 0
    %v2005 = vperm.slane %v57, 1
    %v2008 = vadd.f32 %v2001, %v2004
    %v2009 = vadd.f32 %v2002, %v2005
    %2010 = vst [vmem:[#allocation7] sm:$0xff] %v2008
    %2011 = vst [vmem:[#allocation7 + $0x8] sm:$0xff] %v2009
    // Predicated region
    $region26: #{projection_head.1} parent=1 // pred_check
      _
    $region27: #{projection_head.1} parent=1 // pred_check_branch
      %2013 = sbr.rel (0) target = $region29
    $region28: #{projection_head.1} parent=1 // pred_region
      %2015 = vsyncadd [#allocation4], 0
      %s2017 = sshll.u32 [#allocation7], 4
      %s2018 = int_to_ptr.vmem [resolvable:$true] %s2017
      %s2019 = sshll.u32 %s4, 4
      %s2020 = int_to_ptr.hbm [resolvable:$true] %s2019
      %2022 = dma.vmem_to_hbm [thread:$0]  %s2018, 256, %s2020, [#allocation4]
    $region29: #{projection_head.1} parent=1 // pred_fallthru
      _
    // Predicated region
    $region30: #{projection_head.1} parent=1 // pred_check
      _
    $region31: #{projection_head.1} parent=1 // pred_check_branch
      %2024 = sbr.rel (0) target = $region33
    $region32: #{projection_head.1} parent=1 // pred_region
      %2026 = dma.done [#allocation4], 256
    $region33: #{projection_head.1} parent=1 // pred_fallthru
      _
    %2027 = vsyncpa [#allocation3], 1
    %2028 = vsyncpa [#allocation6], 1
    %2029 = vsyncpa [#allocation4], 1

</llo_original>
